<compile_context>
chip_gen: v7x
topology: tpu7x:2x2x1
jax: 0.10.0
libtpu: 0.0.40
codegen_flags: <defaults>
</compile_context>

<pallas_src>
import functools

import jax
import jax.numpy as jnp
import numpy as np
from jax import lax
from jax.experimental import pallas as pl
from jax.experimental.pallas import tpu as pltpu


def _dupsample_kernel(w_ref, g_ref, x_ref, o_ref, *, n_sub, tm_sub, s2):
    """Fused 1x1 conv + depth-to-space for one (batch, row-block) tile.

    w_ref: (s*s, out_ch, C_in)         resident; weight rows grouped by phase
    g_ref: (s*s, tm_sub, tm_sub*s*s)   resident; 0/1 lane-scatter matrices
    x_ref: (1, C_in, TM)               input pixels, flattened (h, w)
    o_ref: (1, out_ch, TM*s*s)         output pixels, flattened (h, i, w, j)
    """
    out_ch = w_ref.shape[1]

    def process(t):
        xs = x_ref[0, :, pl.ds(t * tm_sub, tm_sub)]           # (C_in, tm_sub)
        acc = jnp.zeros((out_ch, tm_sub * s2), jnp.float32)
        for p in range(s2):                                    # static, s*s small
            # 1x1 conv for phase p (contract C_in on the MXU).
            y = jnp.dot(w_ref[p], xs, preferred_element_type=jnp.float32)
            # Lane scatter: column (th, w) -> column (th, i, w, j).
            acc = acc + jnp.dot(y, g_ref[p], preferred_element_type=jnp.float32)
        o_ref[0, :, pl.ds(t * tm_sub * s2, tm_sub * s2)] = acc.astype(o_ref.dtype)

    if n_sub <= 8:
        # Test / small shapes: fully unrolled, zero control-flow overhead.
        for t in range(n_sub):
            process(t)
    else:
        # Large DMA blocks: keep code size bounded; dynamic lane offsets are
        # multiples of tm_sub (itself a multiple of 128 whenever possible).
        def body(t, carry):
            process(t)
            return carry

        lax.fori_loop(0, n_sub, body, 0)


def _divisors(n):
    return [d for d in range(1, n + 1) if n % d == 0]


def _pick_tiles(H, W, s, out_ch, dtype_bytes, block_bytes_target):
    """Pick (rows per compute sub-chunk r, rows per DMA block tH).

    tm_sub = r*W is the scatter-matmul contraction length (kept small, lane
    aligned when possible); TM = tH*W is the per-grid-step DMA block, sized
    toward `block_bytes_target` of output bytes.  Both always divide H*W, so
    no padding or ragged blocks are ever needed.
    """
    divs = _divisors(H)
    r = None
    for d in divs:                      # lane-aligned, small scatter matrices
        if (d * W) % 128 == 0 and d * W <= 1024:
            r = d
            break
    if r is None:                       # fall back: >= 128 pixels per sub-chunk
        for d in divs:
            if d * W >= 128:
                r = d
                break
    if r is None:                       # tiny images: whole image per sub-chunk
        r = H
    tH = r
    for d in divs:                      # largest block under the byte target
        if d % r == 0:
            out_bytes = d * W * s * s * out_ch * dtype_bytes
            if out_bytes <= block_bytes_target:
                tH = max(tH, d)
    return r, tH


def _build_scatter(W, r, s):
    """G[p][th*W + w, th*W*s*s + i*W*s + w*s + j] = 1, with p = i*s + j."""
    tm_sub = r * W
    q = np.arange(tm_sub)
    th, w = q // W, q % W
    g = np.zeros((s * s, tm_sub, tm_sub * s * s), np.float32)
    for i in range(s):
        for j in range(s):
            cols = th * (W * s * s) + i * (W * s) + w * s + j
            g[i * s + j, q, cols] = 1.0
    return g


@functools.partial(jax.jit, static_argnames=("scale_factor", "block_bytes_target"))
def dupsampling_forward(x_nchw, weight, scale_factor=2,
                        block_bytes_target=2 * 1024 * 1024):
    """DUpsampling forward.

    x_nchw: (N, C_in, H, W)
    weight: (C_total, C_in) with C_total = out_channels * scale_factor**2
            (1x1 conv weight with the trailing 1x1 squeezed, no bias)
    returns: (N, out_channels, H*s, W*s) in NCHW, matching the PyTorch module.
    """
    s = scale_factor
    s2 = s * s
    N, C_in, H, W = x_nchw.shape
    C_total = weight.shape[0]
    assert C_total % s2 == 0, (C_total, s)
    out_ch = C_total // s2
    dtype = x_nchw.dtype
    db = np.dtype(dtype).itemsize

    r, tH = _pick_tiles(H, W, s, out_ch, db, block_bytes_target)
    tm_sub = r * W
    TM = tH * W
    n_sub = tH // r
    M = H * W
    n_blocks = M // TM

    # PyTorch channel order is c_out = i*(out_ch*s) + j*out_ch + k, so a plain
    # reshape groups weight rows by phase p = i*s + j.
    wr = weight.reshape(s2, out_ch, C_in).astype(dtype)
    g = jnp.asarray(_build_scatter(W, r, s), dtype=dtype)
    x3 = x_nchw.reshape(N, C_in, M)  # free: merge of trailing dims

    kernel = functools.partial(_dupsample_kernel, n_sub=n_sub, tm_sub=tm_sub, s2=s2)

    in_block_bytes = C_in * TM * db
    out_block_bytes = out_ch * TM * s2 * db
    g_bytes = s2 * tm_sub * tm_sub * s2 * db
    w_bytes = s2 * out_ch * C_in * db
    vmem_need = 2 * (in_block_bytes + out_block_bytes) + g_bytes + w_bytes
    vmem_limit = int(min(100 * 2**20, max(32 * 2**20, 2 * vmem_need)))

    flops = 2 * N * M * (C_total * C_in + s2 * out_ch * tm_sub)
    bytes_accessed = db * (N * C_in * M + N * out_ch * M * s2) + g_bytes + w_bytes

    out3 = pl.pallas_call(
        kernel,
        out_shape=jax.ShapeDtypeStruct((N, out_ch, M * s2), dtype),
        grid_spec=pltpu.PrefetchScalarGridSpec(
            num_scalar_prefetch=0,
            grid=(N, n_blocks),
            in_specs=[
                # Constant block index -> fetched once, resident in VMEM.
                pl.BlockSpec((s2, out_ch, C_in), lambda n, b: (0, 0, 0)),
                pl.BlockSpec((s2, tm_sub, tm_sub * s2), lambda n, b: (0, 0, 0)),
                # Input pixels: lane-dense, whole image rows per block.
                pl.BlockSpec((1, C_in, TM), lambda n, b: (n, 0, b)),
            ],
            out_specs=pl.BlockSpec((1, out_ch, TM * s2), lambda n, b: (n, 0, b)),
        ),
        compiler_params=pltpu.CompilerParams(
            dimension_semantics=("parallel", "parallel"),
            vmem_limit_bytes=vmem_limit,
        ),
        cost_estimate=pl.CostEstimate(
            flops=flops, transcendentals=0, bytes_accessed=bytes_accessed),
    )(wr, g, x3)

    # Free reshape: the kernel wrote pixels in (h, i, w, j) order, which is
    # exactly row-major (H*s, W*s).  No XLA transpose pass remains.
    return out3.reshape(N, out_ch, H * s, W * s)


def dupsampling_reference(x_nchw, weight, scale_factor=2):
    """Pure-JAX reference following the PyTorch module line by line."""
    s = scale_factor
    x = jnp.einsum("nchw,oc->nohw", x_nchw, weight)  # 1x1 conv, no bias
    n, c, h, w = x.shape
    x = jnp.transpose(x, (0, 3, 2, 1))               # (n, w, h, c)
    x = x.reshape(n, w, h * s, c // s)
    x = jnp.transpose(x, (0, 2, 1, 3))               # (n, h*s, w, c//s)
    x = x.reshape(n, h * s, w * s, c // (s * s))
    x = jnp.transpose(x, (0, 3, 1, 2))               # (n, c//(s*s), h*s, w*s)
    return x


if __name__ == "__main__":
    key = jax.random.PRNGKey(0)
    k_x, k_w = jax.random.split(key)

    # Small shapes consistent with the module.
    N, C_in, H, W = 2, 4, 16, 16
    out_channels, scale = 8, 2
    C_total = out_channels * scale * scale

    x = jax.random.normal(k_x, (N, C_in, H, W), dtype=jnp.float32)
    weight = jax.random.normal(k_w, (C_total, C_in), dtype=jnp.float32) * (
        1.0 / jnp.sqrt(C_in)
    )

    out = dupsampling_forward(x, weight, scale_factor=scale)
    out = jax.block_until_ready(out)

    ref = dupsampling_reference(x, weight, scale_factor=scale)
    assert out.shape == (N, out_channels, H * scale, W * scale), out.shape
    assert jnp.allclose(out, ref, atol=1e-4, rtol=1e-4), float(
        jnp.max(jnp.abs(out - ref))
    )

    print("KERNEL_OK")
</pallas_src>

<mosaic_0001>
module attributes {stable_mosaic.version = 11 : i64} {
  func.func @_dupsample_kernel(%arg0: i32, %arg1: i32, %arg2: memref<4x8x4xf32, #tpu.memory_space<vmem>>, %arg3: memref<4x128x512xf32, #tpu.memory_space<vmem>>, %arg4: memref<1x4x256xf32, #tpu.memory_space<vmem>>, %arg5: memref<1x8x1024xf32, #tpu.memory_space<vmem>>) attributes {dimension_semantics = [#tpu.dimension_semantics<parallel>, #tpu.dimension_semantics<parallel>], iteration_bounds = array<i64: 2, 1>, scalar_prefetch = 0 : i64, scratch_operands = 0 : i64, tpu.core_type = #tpu.core_type<tc>, window_params = [{pipeline_mode = #tpu.pipeline_mode<synchronous>, transform_indices = @transform_0, window_bounds = array<i64: 4, 8, 4>}, {pipeline_mode = #tpu.pipeline_mode<synchronous>, transform_indices = @transform_1, window_bounds = array<i64: 4, 128, 512>}, {transform_indices = @transform_2, window_bounds = array<i64: 1, 4, 256>}, {transform_indices = @transform_3, window_bounds = array<i64: 1, 8, 1024>}]} {
    %c0 = arith.constant 0 : index
    %c0_0 = arith.constant 0 : index
    %c0_1 = arith.constant 0 : index
    %0 = vector.load %arg4[%c0, %c0_0, %c0_1] : memref<1x4x256xf32, #tpu.memory_space<vmem>>, vector<1x4x128xf32>
    %1 = vector.shape_cast %0 : vector<1x4x128xf32> to vector<4x128xf32>
    %cst = arith.constant 0.000000e+00 : f32
    %2 = vector.broadcast %cst : f32 to vector<8x512xf32>
    %c0_2 = arith.constant 0 : index
    %c0_3 = arith.constant 0 : index
    %c0_4 = arith.constant 0 : index
    %3 = vector.load %arg2[%c0_2, %c0_3, %c0_4] : memref<4x8x4xf32, #tpu.memory_space<vmem>>, vector<1x8x4xf32>
    %4 = vector.shape_cast %3 : vector<1x8x4xf32> to vector<8x4xf32>
    %cst_5 = arith.constant dense<0.000000e+00> : vector<8x128xf32>
    %5 = tpu.matmul %4, %1, %cst_5 {dimension_numbers = #tpu.dot_dimension_numbers<[1], [0], [0], [1], [0, 0, 1, 1], [], []>} : vector<8x4xf32>, vector<4x128xf32>, vector<8x128xf32> -> vector<8x128xf32>
    %c0_6 = arith.constant 0 : index
    %c0_7 = arith.constant 0 : index
    %c0_8 = arith.constant 0 : index
    %6 = vector.load %arg3[%c0_6, %c0_7, %c0_8] : memref<4x128x512xf32, #tpu.memory_space<vmem>>, vector<1x128x512xf32>
    %7 = vector.shape_cast %6 : vector<1x128x512xf32> to vector<128x512xf32>
    %cst_9 = arith.constant dense<0.000000e+00> : vector<8x512xf32>
    %8 = tpu.matmul %5, %7, %cst_9 {dimension_numbers = #tpu.dot_dimension_numbers<[1], [0], [0], [1], [0, 0, 1, 1], [], []>} : vector<8x128xf32>, vector<128x512xf32>, vector<8x512xf32> -> vector<8x512xf32>
    %9 = arith.addf %2, %8 : vector<8x512xf32>
    %c1 = arith.constant 1 : index
    %c0_10 = arith.constant 0 : index
    %c0_11 = arith.constant 0 : index
    %10 = vector.load %arg2[%c1, %c0_10, %c0_11] : memref<4x8x4xf32, #tpu.memory_space<vmem>>, vector<1x8x4xf32>
    %11 = vector.shape_cast %10 : vector<1x8x4xf32> to vector<8x4xf32>
    %cst_12 = arith.constant dense<0.000000e+00> : vector<8x128xf32>
    %12 = tpu.matmul %11, %1, %cst_12 {dimension_numbers = #tpu.dot_dimension_numbers<[1], [0], [0], [1], [0, 0, 1, 1], [], []>} : vector<8x4xf32>, vector<4x128xf32>, vector<8x128xf32> -> vector<8x128xf32>
    %c1_13 = arith.constant 1 : index
    %c0_14 = arith.constant 0 : index
    %c0_15 = arith.constant 0 : index
    %13 = vector.load %arg3[%c1_13, %c0_14, %c0_15] : memref<4x128x512xf32, #tpu.memory_space<vmem>>, vector<1x128x512xf32>
    %14 = vector.shape_cast %13 : vector<1x128x512xf32> to vector<128x512xf32>
    %cst_16 = arith.constant dense<0.000000e+00> : vector<8x512xf32>
    %15 = tpu.matmul %12, %14, %cst_16 {dimension_numbers = #tpu.dot_dimension_numbers<[1], [0], [0], [1], [0, 0, 1, 1], [], []>} : vector<8x128xf32>, vector<128x512xf32>, vector<8x512xf32> -> vector<8x512xf32>
    %16 = arith.addf %9, %15 : vector<8x512xf32>
    %c2 = arith.constant 2 : index
    %c0_17 = arith.constant 0 : index
    %c0_18 = arith.constant 0 : index
    %17 = vector.load %arg2[%c2, %c0_17, %c0_18] : memref<4x8x4xf32, #tpu.memory_space<vmem>>, vector<1x8x4xf32>
    %18 = vector.shape_cast %17 : vector<1x8x4xf32> to vector<8x4xf32>
    %cst_19 = arith.constant dense<0.000000e+00> : vector<8x128xf32>
    %19 = tpu.matmul %18, %1, %cst_19 {dimension_numbers = #tpu.dot_dimension_numbers<[1], [0], [0], [1], [0, 0, 1, 1], [], []>} : vector<8x4xf32>, vector<4x128xf32>, vector<8x128xf32> -> vector<8x128xf32>
    %c2_20 = arith.constant 2 : index
    %c0_21 = arith.constant 0 : index
    %c0_22 = arith.constant 0 : index
    %20 = vector.load %arg3[%c2_20, %c0_21, %c0_22] : memref<4x128x512xf32, #tpu.memory_space<vmem>>, vector<1x128x512xf32>
    %21 = vector.shape_cast %20 : vector<1x128x512xf32> to vector<128x512xf32>
    %cst_23 = arith.constant dense<0.000000e+00> : vector<8x512xf32>
    %22 = tpu.matmul %19, %21, %cst_23 {dimension_numbers = #tpu.dot_dimension_numbers<[1], [0], [0], [1], [0, 0, 1, 1], [], []>} : vector<8x128xf32>, vector<128x512xf32>, vector<8x512xf32> -> vector<8x512xf32>
    %23 = arith.addf %16, %22 : vector<8x512xf32>
    %c3 = arith.constant 3 : index
    %c0_24 = arith.constant 0 : index
    %c0_25 = arith.constant 0 : index
    %24 = vector.load %arg2[%c3, %c0_24, %c0_25] : memref<4x8x4xf32, #tpu.memory_space<vmem>>, vector<1x8x4xf32>
    %25 = vector.shape_cast %24 : vector<1x8x4xf32> to vector<8x4xf32>
    %cst_26 = arith.constant dense<0.000000e+00> : vector<8x128xf32>
    %26 = tpu.matmul %25, %1, %cst_26 {dimension_numbers = #tpu.dot_dimension_numbers<[1], [0], [0], [1], [0, 0, 1, 1], [], []>} : vector<8x4xf32>, vector<4x128xf32>, vector<8x128xf32> -> vector<8x128xf32>
    %c3_27 = arith.constant 3 : index
    %c0_28 = arith.constant 0 : index
    %c0_29 = arith.constant 0 : index
    %27 = vector.load %arg3[%c3_27, %c0_28, %c0_29] : memref<4x128x512xf32, #tpu.memory_space<vmem>>, vector<1x128x512xf32>
    %28 = vector.shape_cast %27 : vector<1x128x512xf32> to vector<128x512xf32>
    %cst_30 = arith.constant dense<0.000000e+00> : vector<8x512xf32>
    %29 = tpu.matmul %26, %28, %cst_30 {dimension_numbers = #tpu.dot_dimension_numbers<[1], [0], [0], [1], [0, 0, 1, 1], [], []>} : vector<8x128xf32>, vector<128x512xf32>, vector<8x512xf32> -> vector<8x512xf32>
    %30 = arith.addf %23, %29 : vector<8x512xf32>
    %c0_31 = arith.constant 0 : index
    %c0_32 = arith.constant 0 : index
    %c0_33 = arith.constant 0 : index
    %31 = vector.load %arg5[%c0_31, %c0_32, %c0_33] : memref<1x8x1024xf32, #tpu.memory_space<vmem>>, vector<1x8x512xf32>
    %32 = vector.shape_cast %31 : vector<1x8x512xf32> to vector<8x512xf32>
    %33 = vector.shape_cast %30 : vector<8x512xf32> to vector<1x8x512xf32>
    tpu.vector_store %arg5[%c0_31, %c0_32, %c0_33], %33 {strides = array<i32>} : memref<1x8x1024xf32, #tpu.memory_space<vmem>>, vector<1x8x512xf32>,
    %c0_34 = arith.constant 0 : index
    %c0_35 = arith.constant 0 : index
    %c128 = arith.constant 128 : index
    %34 = vector.load %arg4[%c0_34, %c0_35, %c128] : memref<1x4x256xf32, #tpu.memory_space<vmem>>, vector<1x4x128xf32>
    %35 = vector.shape_cast %34 : vector<1x4x128xf32> to vector<4x128xf32>
    %cst_36 = arith.constant 0.000000e+00 : f32
    %36 = vector.broadcast %cst_36 : f32 to vector<8x512xf32>
    %c0_37 = arith.constant 0 : index
    %c0_38 = arith.constant 0 : index
    %c0_39 = arith.constant 0 : index
    %37 = vector.load %arg2[%c0_37, %c0_38, %c0_39] : memref<4x8x4xf32, #tpu.memory_space<vmem>>, vector<1x8x4xf32>
    %38 = vector.shape_cast %37 : vector<1x8x4xf32> to vector<8x4xf32>
    %cst_40 = arith.constant dense<0.000000e+00> : vector<8x128xf32>
    %39 = tpu.matmul %38, %35, %cst_40 {dimension_numbers = #tpu.dot_dimension_numbers<[1], [0], [0], [1], [0, 0, 1, 1], [], []>} : vector<8x4xf32>, vector<4x128xf32>, vector<8x128xf32> -> vector<8x128xf32>
    %c0_41 = arith.constant 0 : index
    %c0_42 = arith.constant 0 : index
    %c0_43 = arith.constant 0 : index
    %40 = vector.load %arg3[%c0_41, %c0_42, %c0_43] : memref<4x128x512xf32, #tpu.memory_space<vmem>>, vector<1x128x512xf32>
    %41 = vector.shape_cast %40 : vector<1x128x512xf32> to vector<128x512xf32>
    %cst_44 = arith.constant dense<0.000000e+00> : vector<8x512xf32>
    %42 = tpu.matmul %39, %41, %cst_44 {dimension_numbers = #tpu.dot_dimension_numbers<[1], [0], [0], [1], [0, 0, 1, 1], [], []>} : vector<8x128xf32>, vector<128x512xf32>, vector<8x512xf32> -> vector<8x512xf32>
    %43 = arith.addf %36, %42 : vector<8x512xf32>
    %c1_45 = arith.constant 1 : index
    %c0_46 = arith.constant 0 : index
    %c0_47 = arith.constant 0 : index
    %44 = vector.load %arg2[%c1_45, %c0_46, %c0_47] : memref<4x8x4xf32, #tpu.memory_space<vmem>>, vector<1x8x4xf32>
    %45 = vector.shape_cast %44 : vector<1x8x4xf32> to vector<8x4xf32>
    %cst_48 = arith.constant dense<0.000000e+00> : vector<8x128xf32>
    %46 = tpu.matmul %45, %35, %cst_48 {dimension_numbers = #tpu.dot_dimension_numbers<[1], [0], [0], [1], [0, 0, 1, 1], [], []>} : vector<8x4xf32>, vector<4x128xf32>, vector<8x128xf32> -> vector<8x128xf32>
    %c1_49 = arith.constant 1 : index
    %c0_50 = arith.constant 0 : index
    %c0_51 = arith.constant 0 : index
    %47 = vector.load %arg3[%c1_49, %c0_50, %c0_51] : memref<4x128x512xf32, #tpu.memory_space<vmem>>, vector<1x128x512xf32>
    %48 = vector.shape_cast %47 : vector<1x128x512xf32> to vector<128x512xf32>
    %cst_52 = arith.constant dense<0.000000e+00> : vector<8x512xf32>
    %49 = tpu.matmul %46, %48, %cst_52 {dimension_numbers = #tpu.dot_dimension_numbers<[1], [0], [0], [1], [0, 0, 1, 1], [], []>} : vector<8x128xf32>, vector<128x512xf32>, vector<8x512xf32> -> vector<8x512xf32>
    %50 = arith.addf %43, %49 : vector<8x512xf32>
    %c2_53 = arith.constant 2 : index
    %c0_54 = arith.constant 0 : index
    %c0_55 = arith.constant 0 : index
    %51 = vector.load %arg2[%c2_53, %c0_54, %c0_55] : memref<4x8x4xf32, #tpu.memory_space<vmem>>, vector<1x8x4xf32>
    %52 = vector.shape_cast %51 : vector<1x8x4xf32> to vector<8x4xf32>
    %cst_56 = arith.constant dense<0.000000e+00> : vector<8x128xf32>
    %53 = tpu.matmul %52, %35, %cst_56 {dimension_numbers = #tpu.dot_dimension_numbers<[1], [0], [0], [1], [0, 0, 1, 1], [], []>} : vector<8x4xf32>, vector<4x128xf32>, vector<8x128xf32> -> vector<8x128xf32>
    %c2_57 = arith.constant 2 : index
    %c0_58 = arith.constant 0 : index
    %c0_59 = arith.constant 0 : index
    %54 = vector.load %arg3[%c2_57, %c0_58, %c0_59] : memref<4x128x512xf32, #tpu.memory_space<vmem>>, vector<1x128x512xf32>
    %55 = vector.shape_cast %54 : vector<1x128x512xf32> to vector<128x512xf32>
    %cst_60 = arith.constant dense<0.000000e+00> : vector<8x512xf32>
    %56 = tpu.matmul %53, %55, %cst_60 {dimension_numbers = #tpu.dot_dimension_numbers<[1], [0], [0], [1], [0, 0, 1, 1], [], []>} : vector<8x128xf32>, vector<128x512xf32>, vector<8x512xf32> -> vector<8x512xf32>
    %57 = arith.addf %50, %56 : vector<8x512xf32>
    %c3_61 = arith.constant 3 : index
    %c0_62 = arith.constant 0 : index
    %c0_63 = arith.constant 0 : index
    %58 = vector.load %arg2[%c3_61, %c0_62, %c0_63] : memref<4x8x4xf32, #tpu.memory_space<vmem>>, vector<1x8x4xf32>
    %59 = vector.shape_cast %58 : vector<1x8x4xf32> to vector<8x4xf32>
    %cst_64 = arith.constant dense<0.000000e+00> : vector<8x128xf32>
    %60 = tpu.matmul %59, %35, %cst_64 {dimension_numbers = #tpu.dot_dimension_numbers<[1], [0], [0], [1], [0, 0, 1, 1], [], []>} : vector<8x4xf32>, vector<4x128xf32>, vector<8x128xf32> -> vector<8x128xf32>
    %c3_65 = arith.constant 3 : index
    %c0_66 = arith.constant 0 : index
    %c0_67 = arith.constant 0 : index
    %61 = vector.load %arg3[%c3_65, %c0_66, %c0_67] : memref<4x128x512xf32, #tpu.memory_space<vmem>>, vector<1x128x512xf32>
    %62 = vector.shape_cast %61 : vector<1x128x512xf32> to vector<128x512xf32>
    %cst_68 = arith.constant dense<0.000000e+00> : vector<8x512xf32>
    %63 = tpu.matmul %60, %62, %cst_68 {dimension_numbers = #tpu.dot_dimension_numbers<[1], [0], [0], [1], [0, 0, 1, 1], [], []>} : vector<8x128xf32>, vector<128x512xf32>, vector<8x512xf32> -> vector<8x512xf32>
    %64 = arith.addf %57, %63 : vector<8x512xf32>
    %c0_69 = arith.constant 0 : index
    %c0_70 = arith.constant 0 : index
    %c512 = arith.constant 512 : index
    %65 = vector.load %arg5[%c0_69, %c0_70, %c512] : memref<1x8x1024xf32, #tpu.memory_space<vmem>>, vector<1x8x512xf32>
    %66 = vector.shape_cast %65 : vector<1x8x512xf32> to vector<8x512xf32>
    %67 = vector.shape_cast %64 : vector<8x512xf32> to vector<1x8x512xf32>
    tpu.vector_store %arg5[%c0_69, %c0_70, %c512], %67 {strides = array<i32>} : memref<1x8x1024xf32, #tpu.memory_space<vmem>>, vector<1x8x512xf32>,
    return
  }
  func.func @transform_0(%arg0: i32, %arg1: i32) -> (i32, i32, i32) {
    %c0_i32 = arith.constant 0 : i32
    %c0_i32_0 = arith.constant 0 : i32
    %c0_i32_1 = arith.constant 0 : i32
    %c0_i32_2 = arith.constant 0 : i32
    return %c0_i32, %c0_i32_0, %c0_i32_1 : i32, i32, i32
  }
  func.func @transform_1(%arg0: i32, %arg1: i32) -> (i32, i32, i32) {
    %c0_i32 = arith.constant 0 : i32
    %c0_i32_0 = arith.constant 0 : i32
    %c0_i32_1 = arith.constant 0 : i32
    %c0_i32_2 = arith.constant 0 : i32
    return %c0_i32, %c0_i32_0, %c0_i32_1 : i32, i32, i32
  }
  func.func @transform_2(%arg0: i32, %arg1: i32) -> (i32, i32, i32) {
    %c0_i32 = arith.constant 0 : i32
    %c0_i32_0 = arith.constant 0 : i32
    return %arg0, %c0_i32, %arg1 : i32, i32, i32
  }
  func.func @transform_3(%arg0: i32, %arg1: i32) -> (i32, i32, i32) {
    %c0_i32 = arith.constant 0 : i32
    %c0_i32_0 = arith.constant 0 : i32
    return %arg0, %c0_i32, %arg1 : i32, i32, i32
  }
}

</mosaic_0001>

<llo_original>
// kernel: dupsampling_forward.1
$region0: #{dupsampling_forward.1}
  #allocation0 [shape = 'u32[]', space=smem, size = 0x4, offset = 0x4, fixed_abs, tag = 'smem constant byte address 0x4 - core index']
  #allocation1 [shape = 'u32[144,128]{1,0:T(1,128)}', space=vmem, size = 0x12000, scoped, tag = 'internal scratch']
  %s0 = inlined_call_operand.vmem [shape: f32[4,8,4], index: 0, kind: input, shape index: {}]
  %s1 = inlined_call_operand.hbm [shape: f32[4,128,512], index: 1, kind: input, shape index: {}]
  %s2 = inlined_call_operand.vmem [shape: f32[2,4,256], index: 2, kind: input, shape index: {}]
  %s3 = inlined_call_operand.vmem [shape: f32[2,8,1024], index: 3, kind: output, shape index: {}]
  %s4 = sld [smem:[#allocation0]]
  $region49: #{dupsampling_forward.1} parent=0
    _
  %s6 = ssub.s32 1, %s4
  %s7 = scalar_select 0, %s6, %s4
  $region1: #{dupsampling_forward.1} parent=0
    #allocation2 [shape = 'u8[1048576]{0}', space=vmem, size = 0x100000, scoped, tag = 'input window, operand 1, single buffered']
    #allocation3 [shape = 's32[2]{0}', space=sflag, size = 0x8, scoped, tag = 'scoped memory for dupsampling_forward.1']
    %8 = vsyncpa [#allocation3], 0
    loop: start=0, step=1, limit=4
    $region2: #{dupsampling_forward.1} parent=1 // loop_pre_header
      _
    $region3: #{dupsampling_forward.1} parent=1 // loop_header
      %s10 = sphi 0, %s14
      %p11 = scmp.ge.s32.totalorder %s10, 4
      %s17 = sphi 0, %s29
      %s18 = sphi 0, %s25
      %s19 = sphi 0, %s17
      %s20 = sphi 0, %s18
      %s21 = sphi 0, %s19
      %s22 = sphi 0, %s20
      %s30 = sphi 0, %s30
      %s32 = sphi 0, %s30
      %s33 = sphi 0, %s32
      %s47 = sphi 0, %s33
      %s51 = sphi 0, %s51
      %s53 = sphi 0, %s51
      %s54 = sphi 0, %s53
      %s68 = sphi 0, %s54
      %s76 = sphi 0, %s78
      %s79 = sphi 0, %s76
      %s80 = sphi 0, %s79
      %s96 = sphi 0, %s80
      %s104 = sphi 0, %s106
      %s107 = sphi 0, %s104
      %s108 = sphi 0, %s107
      %s124 = sphi 0, %s108
    $region4: #{dupsampling_forward.1} parent=1 // loop_header_branch
      %13 = sbr.rel (%p11) target = $region8
    $region5: #{dupsampling_forward.1} parent=1 // loop_body
      %s15 = ssub.s32 %s10, 1
      %s16 = ssub.s32 %s10, 2
      %s23 = sadd.s32 1, %s18
      %p24 = scmp.ge.s32.totalorder %s23, 1
      %s25 = scalar_select %p24, 0, %s23
      %s26 = sadd.s32 1, %s17
      %s27 = scalar_select %p24, %s26, %s17
      %p28 = scmp.ge.s32.totalorder %s27, 2
      %s29 = scalar_select %p28, 0, %s27
      %s31 = sadd.s32 %s30, 1
      %p34 = scmp.eq.s32.totalorder %s10, 1
      %p35 = scmp.ne.s32.totalorder %s30, %s32
      %p36 = scmp.eq.s32.totalorder %s10, 0
      %p37 = por %p35, %p36
      %p38 = scmp.ne.s32.totalorder %s30, %s32
      %p39 = scmp.eq.s32.totalorder %s15, 1
      %p40 = por %p38, %p39
      %p41 = scmp.ne.s32.totalorder %s32, %s33
      %p42 = scmp.eq.s32.totalorder %s15, 0
      %p43 = por %p41, %p42
      %p44 = scmp.ne.s32.totalorder %s32, %s33
      %p45 = scmp.eq.s32.totalorder %s16, 1
      %p46 = por %p44, %p45
      %p48 = scmp.ne.s32.totalorder %s33, %s47
      %p49 = scmp.eq.s32.totalorder %s16, 0
      %p50 = por %p48, %p49
      %s52 = sadd.s32 %s51, 1
      %p55 = scmp.eq.s32.totalorder %s10, 1
      %p56 = scmp.ne.s32.totalorder %s51, %s53
      %p57 = scmp.eq.s32.totalorder %s10, 0
      %p58 = por %p56, %p57
      %p59 = scmp.ne.s32.totalorder %s51, %s53
      %p60 = scmp.eq.s32.totalorder %s15, 1
      %p61 = por %p59, %p60
      %p62 = scmp.ne.s32.totalorder %s53, %s54
      %p63 = scmp.eq.s32.totalorder %s15, 0
      %p64 = por %p62, %p63
      %p65 = scmp.ne.s32.totalorder %s53, %s54
      %p66 = scmp.eq.s32.totalorder %s16, 1
      %p67 = por %p65, %p66
      %p69 = scmp.ne.s32.totalorder %s54, %s68
      %p70 = scmp.eq.s32.totalorder %s16, 0
      %p71 = por %p69, %p70
      %s72 = ssub.s32 %s17, %s29
      %s73 = ssub.s32 %s18, %s25
      %s74 = sor.u32 %s72, %s73
      %p75 = scmp.eq.s32.totalorder %s74, 0
      %s77 = sadd.s32 %s76, 1
      %s78 = scalar_select %p75, %s76, %s77
      %p81 = pneg %p75
      %p82 = scmp.eq.s32.totalorder %s10, 1
      %p83 = por %p81, %p82
      %p84 = scmp.ne.s32.totalorder %s76, %s79
      %p85 = scmp.eq.s32.totalorder %s10, 0
      %p86 = por %p84, %p85
      %p87 = scmp.ne.s32.totalorder %s76, %s79
      %p88 = scmp.eq.s32.totalorder %s15, 1
      %p89 = por %p87, %p88
      %p90 = scmp.ne.s32.totalorder %s79, %s80
      %p91 = scmp.eq.s32.totalorder %s15, 0
      %p92 = por %p90, %p91
      %p93 = scmp.ne.s32.totalorder %s79, %s80
      %p94 = scmp.eq.s32.totalorder %s16, 1
      %p95 = por %p93, %p94
      %p97 = scmp.ne.s32.totalorder %s80, %s96
      %p98 = scmp.eq.s32.totalorder %s16, 0
      %p99 = por %p97, %p98
      %s100 = ssub.s32 %s17, %s29
      %s101 = ssub.s32 %s18, %s25
      %s102 = sor.u32 %s100, %s101
      %p103 = scmp.eq.s32.totalorder %s102, 0
      %s105 = sadd.s32 %s104, 1
      %s106 = scalar_select %p103, %s104, %s105
      %p109 = pneg %p103
      %p110 = scmp.eq.s32.totalorder %s10, 1
      %p111 = por %p109, %p110
      %p112 = scmp.ne.s32.totalorder %s104, %s107
      %p113 = scmp.eq.s32.totalorder %s10, 0
      %p114 = por %p112, %p113
      %p115 = scmp.ne.s32.totalorder %s104, %s107
      %p116 = scmp.eq.s32.totalorder %s15, 1
      %p117 = por %p115, %p116
      %p118 = scmp.ne.s32.totalorder %s107, %s108
      %p119 = scmp.eq.s32.totalorder %s15, 0
      %p120 = por %p118, %p119
      %p121 = scmp.ne.s32.totalorder %s107, %s108
      %p122 = scmp.eq.s32.totalorder %s16, 1
      %p123 = por %p121, %p122
      %p125 = scmp.ne.s32.totalorder %s108, %s124
      %p126 = scmp.eq.s32.totalorder %s16, 0
      %p127 = por %p125, %p126
      %p128 = scmp.le.s32.totalorder 1, %s10
      %p129 = scmp.lt.s32.totalorder %s10, 3
      %p130 = pnand %p128, %p129
      %p131 = pneg %p130
      // Predicated region
      $region9: #{dupsampling_forward.1} parent=5 // pred_check
        _
      $region10: #{dupsampling_forward.1} parent=5 // pred_check_branch
        %133 = sbr.rel (%p130) target = $region12
      $region11: #{dupsampling_forward.1} parent=5 // pred_region
        %s134 = ssub.s32 %s10, 1
        // Predicated region
        $region13: #{dupsampling_forward.1} parent=11 // pred_check
          %p135 = pneg %p43
        $region14: #{dupsampling_forward.1} parent=11 // pred_check_branch
          %137 = sbr.rel (%p135) target = $region16
        $region15: #{dupsampling_forward.1} parent=11 // pred_region
          _
        $region16: #{dupsampling_forward.1} parent=11 // pred_fallthru
          _
        // Predicated region
        $region17: #{dupsampling_forward.1} parent=11 // pred_check
          %p138 = pneg %p64
        $region18: #{dupsampling_forward.1} parent=11 // pred_check_branch
          %140 = sbr.rel (%p138) target = $region20
        $region19: #{dupsampling_forward.1} parent=11 // pred_region
          %s142 = ssub.s32 32768, 32768
          %143 = vsyncadd [#allocation3], %s142
          %s144 = sshll.u32 [#allocation2], 4
          %s145 = int_to_ptr.vmem [resolvable:$true] %s144
          %150 = dma.hbm_to_vmem [thread:$0]  %s1, 32768, %s145, [#allocation3], 512, 512, 32
        $region20: #{dupsampling_forward.1} parent=11 // pred_fallthru
          _
      $region12: #{dupsampling_forward.1} parent=5 // pred_fallthru
        _
      %p151 = scmp.lt.s32.totalorder %s10, 2
      // Predicated region
      $region21: #{dupsampling_forward.1} parent=5 // pred_check
        %p152 = pneg %p151
      $region22: #{dupsampling_forward.1} parent=5 // pred_check_branch
        %154 = sbr.rel (%p152) target = $region24
      $region23: #{dupsampling_forward.1} parent=5 // pred_region
        // Predicated region
        $region25: #{dupsampling_forward.1} parent=23 // pred_check
          %p155 = pneg %p86
        $region26: #{dupsampling_forward.1} parent=23 // pred_check_branch
          %157 = sbr.rel (%p155) target = $region28
        $region27: #{dupsampling_forward.1} parent=23 // pred_region
          %s158 = smul.u32 2, %s18
          %p159 = scmp.lt.s32.totalorder %s17, 1
          %s160 = scalar_select %p159, %s17, 1
          %p161 = scmp.lt.s32.totalorder %s158, 1
          %s162 = scalar_select %p161, %s158, 1
          %s163 = smul.addr %s160, 2
          %s164 = sadd.s32 %s162, %s163
          %s165 = smul.addr %s164, 4
          %s166 = scalar_lea.vmem %s2, %s165
          %s167 = smul.u32 2, %s18
        $region28: #{dupsampling_forward.1} parent=23 // pred_fallthru
          _
      $region24: #{dupsampling_forward.1} parent=5 // pred_fallthru
        _
      %p168 = scmp.le.s32.totalorder 1, %s10
      %p169 = scmp.lt.s32.totalorder %s10, 3
      %p170 = pnand %p168, %p169
      %p171 = pneg %p170
      // Predicated region
      $region29: #{dupsampling_forward.1} parent=5 // pred_check
        _
      $region30: #{dupsampling_forward.1} parent=5 // pred_check_branch
        %173 = sbr.rel (%p170) target = $region32
      $region31: #{dupsampling_forward.1} parent=5 // pred_region
        %s174 = ssub.s32 %s10, 1
        // Predicated region
        $region33: #{dupsampling_forward.1} parent=31 // pred_check
          %p175 = pneg %p64
        $region34: #{dupsampling_forward.1} parent=31 // pred_check_branch
          %177 = sbr.rel (%p175) target = $region36
        $region35: #{dupsampling_forward.1} parent=31 // pred_region
          %178 = dma.done [#allocation3], 32768
        $region36: #{dupsampling_forward.1} parent=31 // pred_fallthru
          _
        %p179 = pneg %p43
        %p180 = pneg %p40
        %p181 = pneg %p64
        %p182 = pneg %p61
        %s183 = smul.u32 2, %s20
        %p184 = scmp.lt.s32.totalorder %s19, 1
        %s185 = scalar_select %p184, %s19, 1
        %p186 = scmp.lt.s32.totalorder %s183, 1
        %s187 = scalar_select %p186, %s183, 1
        %s188 = smul.addr %s185, 2
        %s189 = sadd.s32 %s187, %s188
        %s190 = smul.addr %s189, 4
        %s191 = scalar_lea.vmem %s2, %s190
        %p192 = pneg %p92
        %p193 = pneg %p89
        %p194 = pneg %p120
        %p195 = pneg %p117
        %s196 = smul.u32 8, %s20
        %p197 = scmp.lt.s32.totalorder %s19, 1
        %s198 = scalar_select %p197, %s19, 1
        %p199 = scmp.lt.s32.totalorder %s196, 7
        %s200 = scalar_select %p199, %s196, 7
        %s201 = smul.addr %s198, 8
        %s202 = sadd.s32 %s200, %s201
        %s203 = smul.addr %s202, 8
        %s204 = scalar_lea.vmem %s3, %s203
        %s205 = smul.u32 2, %s20
        %p206 = scmp.lt.s32.totalorder %s19, 1
        %s207 = scalar_select %p206, %s19, 1
        %p208 = scmp.lt.s32.totalorder %s205, 1
        %s209 = scalar_select %p208, %s205, 1
        %s210 = smul.addr %s207, 2
        %s211 = sadd.s32 %s209, %s210
        %s212 = smul.addr %s211, 4
        %s213 = scalar_lea.vmem %s2, %s212
        %s214 = smul.u32 2, %s20
        %s215 = smul.u32 8, %s20
        %p216 = scmp.lt.s32.totalorder %s19, 1
        %s217 = scalar_select %p216, %s19, 1
        %p218 = scmp.lt.s32.totalorder %s215, 7
        %s219 = scalar_select %p218, %s215, 7
        %s220 = smul.addr %s217, 8
        %s221 = sadd.s32 %s219, %s220
        %s222 = smul.addr %s221, 8
        %s223 = scalar_lea.vmem %s3, %s222
        %s224 = smul.u32 8, %s20
        %v225 = vld [vmem:[%s213] sm:$0xf]
        %v226 = vld [vmem:[%s0] sm:$0xff]
        %vm227 = vcmask 31744
        %v229 = vsel %vm227, %v226, 0
        %vm231 = vcmask 1043456
        %v233 = vsel %vm231, %v225, 0
        %235 = vmatprep.subr.mxu0 0.0
        %236 = vmatpush1.msra.mxu0 %v233
        %237 = vmatprep.subr.mxu0 0.0
        %238 = vmatpush1.msra.mxu0 0.0
        %239 = vmatprep.subr.mxu0 0.0
        %240 = vmatpush1.msra.mxu0 0.0
        %241 = vmatprep.subr.mxu0 0.0
        %242 = vmatpush1.msra.mxu0 0.0
        %243 = vmatprep.subr.mxu0 0.0
        %244 = vmatpush1.msra.mxu0 0.0
        %245 = vmatprep.subr.mxu0 0.0
        %246 = vmatpush1.msra.mxu0 0.0
        %247 = vmatprep.subr.mxu0 0.0
        %248 = vmatpush1.msra.mxu0 0.0
        %249 = vmatprep.subr.mxu0 0.0
        %250 = vmatpush1.msra.mxu0 0.0
        %251 = vmatprep.subr.mxu0 0.0
        %252 = vmatpush1.msra.mxu0 0.0
        %253 = vmatprep.subr.mxu0 0.0
        %254 = vmatpush1.msra.mxu0 0.0
        %255 = vmatprep.subr.mxu0 0.0
        %256 = vmatpush1.msra.mxu0 0.0
        %257 = vmatprep.subr.mxu0 0.0
        %258 = vmatpush1.msra.mxu0 0.0
        %259 = vmatprep.subr.mxu0 0.0
        %260 = vmatpush1.msra.mxu0 0.0
        %261 = vmatprep.subr.mxu0 0.0
        %262 = vmatpush1.msra.mxu0 0.0
        %263 = vmatprep.subr.mxu0 0.0
        %264 = vmatpush1.msra.mxu0 0.0
        %265 = vmatprep.subr.mxu0 0.0
        %266 = vmatpush1.msra.mxu0 0.0
        %267 = vmatprep.subr.mxu0 0.0
        %268 = vmatpush1.msra.mxu0 0.0
        %269 = vmatprep.subr.mxu0 0.0
        %270 = vmatpush1.msra.mxu0 0.0
        %271 = vmatprep.subr.mxu0 0.0
        %272 = vmatpush1.msra.mxu0 0.0
        %273 = vmatprep.subr.mxu0 0.0
        %274 = vmatpush1.msra.mxu0 0.0
        %275 = vmatprep.subr.mxu0 0.0
        %276 = vmatpush1.msra.mxu0 0.0
        %277 = vmatprep.subr.mxu0 0.0
        %278 = vmatpush1.msra.mxu0 0.0
        %279 = vmatprep.subr.mxu0 0.0
        %280 = vmatpush1.msra.mxu0 0.0
        %281 = vmatprep.subr.mxu0 0.0
        %282 = vmatpush1.msra.mxu0 0.0
        %283 = vmatprep.subr.mxu0 0.0
        %284 = vmatpush1.msra.mxu0 0.0
        %285 = vmatprep.subr.mxu0 0.0
        %286 = vmatpush1.msra.mxu0 0.0
        %287 = vmatprep.subr.mxu0 0.0
        %288 = vmatpush1.msra.mxu0 0.0
        %289 = vmatprep.subr.mxu0 0.0
        %290 = vmatpush1.msra.mxu0 0.0
        %291 = vmatprep.subr.mxu0 0.0
        %292 = vmatpush1.msra.mxu0 0.0
        %293 = vmatprep.subr.mxu0 0.0
        %294 = vmatpush1.msra.mxu0 0.0
        %295 = vmatprep.subr.mxu0 0.0
        %296 = vmatpush1.msra.mxu0 0.0
        %297 = vmatprep.subr.mxu0 0.0
        %298 = vmatpush1.msra.mxu0 0.0
        %299 = vmatprep.mubr.f32.mxu0 0.0
        %300 = vmatmul.mubr.f32.gmra.mrb[0].mxu0 %v229
        %v301 = vpop.f32.mrb[0].mxu0
        %v302 = vadd.f32 0.0, %v301
        %v303 = vpop.f32.mrb[0].mxu0
        %304 = vdwg.mxu0
        %v305 = vld [vmem:[#allocation2] sm:$0xff]
        %v306 = vld [vmem:[#allocation2 + $0x8] sm:$0xff]
        %v307 = vld [vmem:[#allocation2 + $0x10] sm:$0xff]
        %v308 = vld [vmem:[#allocation2 + $0x18] sm:$0xff]
        %v309 = vld [vmem:[#allocation2 + $0x20] sm:$0xff]
        %v310 = vld [vmem:[#allocation2 + $0x28] sm:$0xff]
        %v311 = vld [vmem:[#allocation2 + $0x30] sm:$0xff]
        %v312 = vld [vmem:[#allocation2 + $0x38] sm:$0xff]
        %v313 = vld [vmem:[#allocation2 + $0x40] sm:$0xff]
        %v314 = vld [vmem:[#allocation2 + $0x48] sm:$0xff]
        %v315 = vld [vmem:[#allocation2 + $0x50] sm:$0xff]
        %v316 = vld [vmem:[#allocation2 + $0x58] sm:$0xff]
        %v317 = vld [vmem:[#allocation2 + $0x60] sm:$0xff]
        %v318 = vld [vmem:[#allocation2 + $0x68] sm:$0xff]
        %v319 = vld [vmem:[#allocation2 + $0x70] sm:$0xff]
        %v320 = vld [vmem:[#allocation2 + $0x78] sm:$0xff]
        %v321 = vld [vmem:[#allocation2 + $0x80] sm:$0xff]
        %v322 = vld [vmem:[#allocation2 + $0x88] sm:$0xff]
        %v323 = vld [vmem:[#allocation2 + $0x90] sm:$0xff]
        %v324 = vld [vmem:[#allocation2 + $0x98] sm:$0xff]
        %v325 = vld [vmem:[#allocation2 + $0xa0] sm:$0xff]
        %v326 = vld [vmem:[#allocation2 + $0xa8] sm:$0xff]
        %v327 = vld [vmem:[#allocation2 + $0xb0] sm:$0xff]
        %v328 = vld [vmem:[#allocation2 + $0xb8] sm:$0xff]
        %v329 = vld [vmem:[#allocation2 + $0xc0] sm:$0xff]
        %v330 = vld [vmem:[#allocation2 + $0xc8] sm:$0xff]
        %v331 = vld [vmem:[#allocation2 + $0xd0] sm:$0xff]
        %v332 = vld [vmem:[#allocation2 + $0xd8] sm:$0xff]
        %v333 = vld [vmem:[#allocation2 + $0xe0] sm:$0xff]
        %v334 = vld [vmem:[#allocation2 + $0xe8] sm:$0xff]
        %v335 = vld [vmem:[#allocation2 + $0xf0] sm:$0xff]
        %v336 = vld [vmem:[#allocation2 + $0xf8] sm:$0xff]
        %v337 = vld [vmem:[#allocation2 + $0x100] sm:$0xff]
        %v338 = vld [vmem:[#allocation2 + $0x108] sm:$0xff]
        %v339 = vld [vmem:[#allocation2 + $0x110] sm:$0xff]
        %v340 = vld [vmem:[#allocation2 + $0x118] sm:$0xff]
        %v341 = vld [vmem:[#allocation2 + $0x120] sm:$0xff]
        %v342 = vld [vmem:[#allocation2 + $0x128] sm:$0xff]
        %v343 = vld [vmem:[#allocation2 + $0x130] sm:$0xff]
        %v344 = vld [vmem:[#allocation2 + $0x138] sm:$0xff]
        %v345 = vld [vmem:[#allocation2 + $0x140] sm:$0xff]
        %v346 = vld [vmem:[#allocation2 + $0x148] sm:$0xff]
        %v347 = vld [vmem:[#allocation2 + $0x150] sm:$0xff]
        %v348 = vld [vmem:[#allocation2 + $0x158] sm:$0xff]
        %v349 = vld [vmem:[#allocation2 + $0x160] sm:$0xff]
        %v350 = vld [vmem:[#allocation2 + $0x168] sm:$0xff]
        %v351 = vld [vmem:[#allocation2 + $0x170] sm:$0xff]
        %v352 = vld [vmem:[#allocation2 + $0x178] sm:$0xff]
        %v353 = vld [vmem:[#allocation2 + $0x180] sm:$0xff]
        %v354 = vld [vmem:[#allocation2 + $0x188] sm:$0xff]
        %v355 = vld [vmem:[#allocation2 + $0x190] sm:$0xff]
        %v356 = vld [vmem:[#allocation2 + $0x198] sm:$0xff]
        %v357 = vld [vmem:[#allocation2 + $0x1a0] sm:$0xff]
        %v358 = vld [vmem:[#allocation2 + $0x1a8] sm:$0xff]
        %v359 = vld [vmem:[#allocation2 + $0x1b0] sm:$0xff]
        %v360 = vld [vmem:[#allocation2 + $0x1b8] sm:$0xff]
        %v361 = vld [vmem:[#allocation2 + $0x1c0] sm:$0xff]
        %v362 = vld [vmem:[#allocation2 + $0x1c8] sm:$0xff]
        %v363 = vld [vmem:[#allocation2 + $0x1d0] sm:$0xff]
        %v364 = vld [vmem:[#allocation2 + $0x1d8] sm:$0xff]
        %v365 = vld [vmem:[#allocation2 + $0x1e0] sm:$0xff]
        %v366 = vld [vmem:[#allocation2 + $0x1e8] sm:$0xff]
        %v367 = vld [vmem:[#allocation2 + $0x1f0] sm:$0xff]
        %v368 = vld [vmem:[#allocation2 + $0x1f8] sm:$0xff]
        %s369 = scalar_lea.vmem %s0, 8
        %v370 = vld [vmem:[%s369] sm:$0xff]
        %v372 = vsel %vm227, %v370, 0
        %374 = vmatprep.subr.mxu0 0.0
        %375 = vmatpush1.msra.mxu0 %v233
        %376 = vmatprep.subr.mxu0 0.0
        %377 = vmatpush1.msra.mxu0 0.0
        %378 = vmatprep.subr.mxu0 0.0
        %379 = vmatpush1.msra.mxu0 0.0
        %380 = vmatprep.subr.mxu0 0.0
        %381 = vmatpush1.msra.mxu0 0.0
        %382 = vmatprep.subr.mxu0 0.0
        %383 = vmatpush1.msra.mxu0 0.0
        %384 = vmatprep.subr.mxu0 0.0
        %385 = vmatpush1.msra.mxu0 0.0
        %386 = vmatprep.subr.mxu0 0.0
        %387 = vmatpush1.msra.mxu0 0.0
        %388 = vmatprep.subr.mxu0 0.0
        %389 = vmatpush1.msra.mxu0 0.0
        %390 = vmatprep.subr.mxu0 0.0
        %391 = vmatpush1.msra.mxu0 0.0
        %392 = vmatprep.subr.mxu0 0.0
        %393 = vmatpush1.msra.mxu0 0.0
        %394 = vmatprep.subr.mxu0 0.0
        %395 = vmatpush1.msra.mxu0 0.0
        %396 = vmatprep.subr.mxu0 0.0
        %397 = vmatpush1.msra.mxu0 0.0
        %398 = vmatprep.subr.mxu0 0.0
        %399 = vmatpush1.msra.mxu0 0.0
        %400 = vmatprep.subr.mxu0 0.0
        %401 = vmatpush1.msra.mxu0 0.0
        %402 = vmatprep.subr.mxu0 0.0
        %403 = vmatpush1.msra.mxu0 0.0
        %404 = vmatprep.subr.mxu0 0.0
        %405 = vmatpush1.msra.mxu0 0.0
        %406 = vmatprep.subr.mxu0 0.0
        %407 = vmatpush1.msra.mxu0 0.0
        %408 = vmatprep.subr.mxu0 0.0
        %409 = vmatpush1.msra.mxu0 0.0
        %410 = vmatprep.subr.mxu0 0.0
        %411 = vmatpush1.msra.mxu0 0.0
        %412 = vmatprep.subr.mxu0 0.0
        %413 = vmatpush1.msra.mxu0 0.0
        %414 = vmatprep.subr.mxu0 0.0
        %415 = vmatpush1.msra.mxu0 0.0
        %416 = vmatprep.subr.mxu0 0.0
        %417 = vmatpush1.msra.mxu0 0.0
        %418 = vmatprep.subr.mxu0 0.0
        %419 = vmatpush1.msra.mxu0 0.0
        %420 = vmatprep.subr.mxu0 0.0
        %421 = vmatpush1.msra.mxu0 0.0
        %422 = vmatprep.subr.mxu0 0.0
        %423 = vmatpush1.msra.mxu0 0.0
        %424 = vmatprep.subr.mxu0 0.0
        %425 = vmatpush1.msra.mxu0 0.0
        %426 = vmatprep.subr.mxu0 0.0
        %427 = vmatpush1.msra.mxu0 0.0
        %428 = vmatprep.subr.mxu0 0.0
        %429 = vmatpush1.msra.mxu0 0.0
        %430 = vmatprep.subr.mxu0 0.0
        %431 = vmatpush1.msra.mxu0 0.0
        %432 = vmatprep.subr.mxu0 0.0
        %433 = vmatpush1.msra.mxu0 0.0
        %434 = vmatprep.subr.mxu0 0.0
        %435 = vmatpush1.msra.mxu0 0.0
        %436 = vmatprep.subr.mxu0 0.0
        %437 = vmatpush1.msra.mxu0 0.0
        %438 = vmatprep.mubr.f32.mxu0 0.0
        %439 = vmatmul.mubr.f32.gmra.mrb[0].mxu0 %v372
        %v440 = vpop.f32.mrb[0].mxu0
        %v441 = vadd.f32 0.0, %v440
        %v442 = vpop.f32.mrb[0].mxu0
        %443 = vdwg.mxu0
        %s444 = scalar_lea.vmem [#allocation2], 512
        %v445 = vld [vmem:[%s444] sm:$0xff]
        %v446 = vld [vmem:[%s444 + $0x8] sm:$0xff]
        %v447 = vld [vmem:[%s444 + $0x10] sm:$0xff]
        %v448 = vld [vmem:[%s444 + $0x18] sm:$0xff]
        %v449 = vld [vmem:[%s444 + $0x20] sm:$0xff]
        %v450 = vld [vmem:[%s444 + $0x28] sm:$0xff]
        %v451 = vld [vmem:[%s444 + $0x30] sm:$0xff]
        %v452 = vld [vmem:[%s444 + $0x38] sm:$0xff]
        %v453 = vld [vmem:[%s444 + $0x40] sm:$0xff]
        %v454 = vld [vmem:[%s444 + $0x48] sm:$0xff]
        %v455 = vld [vmem:[%s444 + $0x50] sm:$0xff]
        %v456 = vld [vmem:[%s444 + $0x58] sm:$0xff]
        %v457 = vld [vmem:[%s444 + $0x60] sm:$0xff]
        %v458 = vld [vmem:[%s444 + $0x68] sm:$0xff]
        %v459 = vld [vmem:[%s444 + $0x70] sm:$0xff]
        %v460 = vld [vmem:[%s444 + $0x78] sm:$0xff]
        %v461 = vld [vmem:[%s444 + $0x80] sm:$0xff]
        %v462 = vld [vmem:[%s444 + $0x88] sm:$0xff]
        %v463 = vld [vmem:[%s444 + $0x90] sm:$0xff]
        %v464 = vld [vmem:[%s444 + $0x98] sm:$0xff]
        %v465 = vld [vmem:[%s444 + $0xa0] sm:$0xff]
        %v466 = vld [vmem:[%s444 + $0xa8] sm:$0xff]
        %v467 = vld [vmem:[%s444 + $0xb0] sm:$0xff]
        %v468 = vld [vmem:[%s444 + $0xb8] sm:$0xff]
        %v469 = vld [vmem:[%s444 + $0xc0] sm:$0xff]
        %v470 = vld [vmem:[%s444 + $0xc8] sm:$0xff]
        %v471 = vld [vmem:[%s444 + $0xd0] sm:$0xff]
        %v472 = vld [vmem:[%s444 + $0xd8] sm:$0xff]
        %v473 = vld [vmem:[%s444 + $0xe0] sm:$0xff]
        %v474 = vld [vmem:[%s444 + $0xe8] sm:$0xff]
        %v475 = vld [vmem:[%s444 + $0xf0] sm:$0xff]
        %v476 = vld [vmem:[%s444 + $0xf8] sm:$0xff]
        %v477 = vld [vmem:[%s444 + $0x100] sm:$0xff]
        %v478 = vld [vmem:[%s444 + $0x108] sm:$0xff]
        %v479 = vld [vmem:[%s444 + $0x110] sm:$0xff]
        %v480 = vld [vmem:[%s444 + $0x118] sm:$0xff]
        %v481 = vld [vmem:[%s444 + $0x120] sm:$0xff]
        %v482 = vld [vmem:[%s444 + $0x128] sm:$0xff]
        %v483 = vld [vmem:[%s444 + $0x130] sm:$0xff]
        %v484 = vld [vmem:[%s444 + $0x138] sm:$0xff]
        %v485 = vld [vmem:[%s444 + $0x140] sm:$0xff]
        %v486 = vld [vmem:[%s444 + $0x148] sm:$0xff]
        %v487 = vld [vmem:[%s444 + $0x150] sm:$0xff]
        %v488 = vld [vmem:[%s444 + $0x158] sm:$0xff]
        %v489 = vld [vmem:[%s444 + $0x160] sm:$0xff]
        %v490 = vld [vmem:[%s444 + $0x168] sm:$0xff]
        %v491 = vld [vmem:[%s444 + $0x170] sm:$0xff]
        %v492 = vld [vmem:[%s444 + $0x178] sm:$0xff]
        %v493 = vld [vmem:[%s444 + $0x180] sm:$0xff]
        %v494 = vld [vmem:[%s444 + $0x188] sm:$0xff]
        %v495 = vld [vmem:[%s444 + $0x190] sm:$0xff]
        %v496 = vld [vmem:[%s444 + $0x198] sm:$0xff]
        %v497 = vld [vmem:[%s444 + $0x1a0] sm:$0xff]
        %v498 = vld [vmem:[%s444 + $0x1a8] sm:$0xff]
        %v499 = vld [vmem:[%s444 + $0x1b0] sm:$0xff]
        %v500 = vld [vmem:[%s444 + $0x1b8] sm:$0xff]
        %v501 = vld [vmem:[%s444 + $0x1c0] sm:$0xff]
        %v502 = vld [vmem:[%s444 + $0x1c8] sm:$0xff]
        %v503 = vld [vmem:[%s444 + $0x1d0] sm:$0xff]
        %v504 = vld [vmem:[%s444 + $0x1d8] sm:$0xff]
        %v505 = vld [vmem:[%s444 + $0x1e0] sm:$0xff]
        %v506 = vld [vmem:[%s444 + $0x1e8] sm:$0xff]
        %v507 = vld [vmem:[%s444 + $0x1f0] sm:$0xff]
        %v508 = vld [vmem:[%s444 + $0x1f8] sm:$0xff]
        %509 = vmatprep.subr.mxu0 %v446
        %510 = vmatpush1.msra.mxu0 %v445
        %511 = vmatprep.subr.mxu0 %v450
        %512 = vmatpush1.msra.mxu0 %v449
        %513 = vmatprep.subr.mxu0 %v454
        %514 = vmatpush1.msra.mxu0 %v453
        %515 = vmatprep.subr.mxu0 %v458
        %516 = vmatpush1.msra.mxu0 %v457
        %517 = vmatprep.subr.mxu0 %v462
        %518 = vmatpush1.msra.mxu0 %v461
        %519 = vmatprep.subr.mxu0 %v466
        %520 = vmatpush1.msra.mxu0 %v465
        %521 = vmatprep.subr.mxu0 %v470
        %522 = vmatpush1.msra.mxu0 %v469
        %523 = vmatprep.subr.mxu0 %v474
        %524 = vmatpush1.msra.mxu0 %v473
        %525 = vmatprep.subr.mxu0 %v478
        %526 = vmatpush1.msra.mxu0 %v477
        %527 = vmatprep.subr.mxu0 %v482
        %528 = vmatpush1.msra.mxu0 %v481
        %529 = vmatprep.subr.mxu0 %v486
        %530 = vmatpush1.msra.mxu0 %v485
        %531 = vmatprep.subr.mxu0 %v490
        %532 = vmatpush1.msra.mxu0 %v489
        %533 = vmatprep.subr.mxu0 %v494
        %534 = vmatpush1.msra.mxu0 %v493
        %535 = vmatprep.subr.mxu0 %v498
        %536 = vmatpush1.msra.mxu0 %v497
        %537 = vmatprep.subr.mxu0 %v502
        %538 = vmatpush1.msra.mxu0 %v501
        %539 = vmatprep.subr.mxu0 %v506
        %540 = vmatpush1.msra.mxu0 %v505
        %541 = vmatprep.subr.mxu0 0.0
        %542 = vmatpush1.msra.mxu0 0.0
        %543 = vmatprep.subr.mxu0 0.0
        %544 = vmatpush1.msra.mxu0 0.0
        %545 = vmatprep.subr.mxu0 0.0
        %546 = vmatpush1.msra.mxu0 0.0
        %547 = vmatprep.subr.mxu0 0.0
        %548 = vmatpush1.msra.mxu0 0.0
        %549 = vmatprep.subr.mxu0 0.0
        %550 = vmatpush1.msra.mxu0 0.0
        %551 = vmatprep.subr.mxu0 0.0
        %552 = vmatpush1.msra.mxu0 0.0
        %553 = vmatprep.subr.mxu0 0.0
        %554 = vmatpush1.msra.mxu0 0.0
        %555 = vmatprep.subr.mxu0 0.0
        %556 = vmatpush1.msra.mxu0 0.0
        %557 = vmatprep.subr.mxu0 0.0
        %558 = vmatpush1.msra.mxu0 0.0
        %559 = vmatprep.subr.mxu0 0.0
        %560 = vmatpush1.msra.mxu0 0.0
        %561 = vmatprep.subr.mxu0 0.0
        %562 = vmatpush1.msra.mxu0 0.0
        %563 = vmatprep.subr.mxu0 0.0
        %564 = vmatpush1.msra.mxu0 0.0
        %565 = vmatprep.subr.mxu0 0.0
        %566 = vmatpush1.msra.mxu0 0.0
        %567 = vmatprep.subr.mxu0 0.0
        %568 = vmatpush1.msra.mxu0 0.0
        %569 = vmatprep.subr.mxu0 0.0
        %570 = vmatpush1.msra.mxu0 0.0
        %571 = vmatprep.subr.mxu0 0.0
        %572 = vmatpush1.msra.mxu0 0.0
        %573 = vmatprep.mubr.f32.mxu0 0.0
        %574 = vmatmul.mubr.f32.gmra.mrb[0].mxu0 %v441
        %v575 = vpop.f32.mrb[0].mxu0
        %v576 = vadd.f32 0.0, %v575
        %v577 = vpop.f32.mrb[0].mxu0
        %v578 = vadd.f32 0.0, %v577
        %579 = vdwg.mxu0
        %580 = vmatprep.subr.mxu0 %v448
        %581 = vmatpush1.msra.mxu0 %v447
        %582 = vmatprep.subr.mxu0 %v452
        %583 = vmatpush1.msra.mxu0 %v451
        %584 = vmatprep.subr.mxu0 %v456
        %585 = vmatpush1.msra.mxu0 %v455
        %586 = vmatprep.subr.mxu0 %v460
        %587 = vmatpush1.msra.mxu0 %v459
        %588 = vmatprep.subr.mxu0 %v464
        %589 = vmatpush1.msra.mxu0 %v463
        %590 = vmatprep.subr.mxu0 %v468
        %591 = vmatpush1.msra.mxu0 %v467
        %592 = vmatprep.subr.mxu0 %v472
        %593 = vmatpush1.msra.mxu0 %v471
        %594 = vmatprep.subr.mxu0 %v476
        %595 = vmatpush1.msra.mxu0 %v475
        %596 = vmatprep.subr.mxu0 %v480
        %597 = vmatpush1.msra.mxu0 %v479
        %598 = vmatprep.subr.mxu0 %v484
        %599 = vmatpush1.msra.mxu0 %v483
        %600 = vmatprep.subr.mxu0 %v488
        %601 = vmatpush1.msra.mxu0 %v487
        %602 = vmatprep.subr.mxu0 %v492
        %603 = vmatpush1.msra.mxu0 %v491
        %604 = vmatprep.subr.mxu0 %v496
        %605 = vmatpush1.msra.mxu0 %v495
        %606 = vmatprep.subr.mxu0 %v500
        %607 = vmatpush1.msra.mxu0 %v499
        %608 = vmatprep.subr.mxu0 %v504
        %609 = vmatpush1.msra.mxu0 %v503
        %610 = vmatprep.subr.mxu0 %v508
        %611 = vmatpush1.msra.mxu0 %v507
        %612 = vmatprep.subr.mxu0 0.0
        %613 = vmatpush1.msra.mxu0 0.0
        %614 = vmatprep.subr.mxu0 0.0
        %615 = vmatpush1.msra.mxu0 0.0
        %616 = vmatprep.subr.mxu0 0.0
        %617 = vmatpush1.msra.mxu0 0.0
        %618 = vmatprep.subr.mxu0 0.0
        %619 = vmatpush1.msra.mxu0 0.0
        %620 = vmatprep.subr.mxu0 0.0
        %621 = vmatpush1.msra.mxu0 0.0
        %622 = vmatprep.subr.mxu0 0.0
        %623 = vmatpush1.msra.mxu0 0.0
        %624 = vmatprep.subr.mxu0 0.0
        %625 = vmatpush1.msra.mxu0 0.0
        %626 = vmatprep.subr.mxu0 0.0
        %627 = vmatpush1.msra.mxu0 0.0
        %628 = vmatprep.subr.mxu0 0.0
        %629 = vmatpush1.msra.mxu0 0.0
        %630 = vmatprep.subr.mxu0 0.0
        %631 = vmatpush1.msra.mxu0 0.0
        %632 = vmatprep.subr.mxu0 0.0
        %633 = vmatpush1.msra.mxu0 0.0
        %634 = vmatprep.subr.mxu0 0.0
        %635 = vmatpush1.msra.mxu0 0.0
        %636 = vmatprep.subr.mxu0 0.0
        %637 = vmatpush1.msra.mxu0 0.0
        %638 = vmatprep.subr.mxu0 0.0
        %639 = vmatpush1.msra.mxu0 0.0
        %640 = vmatprep.subr.mxu0 0.0
        %641 = vmatpush1.msra.mxu0 0.0
        %642 = vmatprep.subr.mxu0 0.0
        %643 = vmatpush1.msra.mxu0 0.0
        %644 = vmatprep.mubr.f32.mxu0 0.0
        %645 = vmatmul.mubr.f32.gmra.mrb[0].mxu0 %v441
        %v646 = vpop.f32.mrb[0].mxu0
        %v647 = vadd.f32 0.0, %v646
        %v648 = vpop.f32.mrb[0].mxu0
        %v649 = vadd.f32 0.0, %v648
        %650 = vdwg.mxu0
        %651 = vmatprep.subr.mxu0 %v306
        %652 = vmatpush1.msra.mxu0 %v305
        %653 = vmatprep.subr.mxu0 %v310
        %654 = vmatpush1.msra.mxu0 %v309
        %655 = vmatprep.subr.mxu0 %v314
        %656 = vmatpush1.msra.mxu0 %v313
        %657 = vmatprep.subr.mxu0 %v318
        %658 = vmatpush1.msra.mxu0 %v317
        %659 = vmatprep.subr.mxu0 %v322
        %660 = vmatpush1.msra.mxu0 %v321
        %661 = vmatprep.subr.mxu0 %v326
        %662 = vmatpush1.msra.mxu0 %v325
        %663 = vmatprep.subr.mxu0 %v330
        %664 = vmatpush1.msra.mxu0 %v329
        %665 = vmatprep.subr.mxu0 %v334
        %666 = vmatpush1.msra.mxu0 %v333
        %667 = vmatprep.subr.mxu0 %v338
        %668 = vmatpush1.msra.mxu0 %v337
        %669 = vmatprep.subr.mxu0 %v342
        %670 = vmatpush1.msra.mxu0 %v341
        %671 = vmatprep.subr.mxu0 %v346
        %672 = vmatpush1.msra.mxu0 %v345
        %673 = vmatprep.subr.mxu0 %v350
        %674 = vmatpush1.msra.mxu0 %v349
        %675 = vmatprep.subr.mxu0 %v354
        %676 = vmatpush1.msra.mxu0 %v353
        %677 = vmatprep.subr.mxu0 %v358
        %678 = vmatpush1.msra.mxu0 %v357
        %679 = vmatprep.subr.mxu0 %v362
        %680 = vmatpush1.msra.mxu0 %v361
        %681 = vmatprep.subr.mxu0 %v366
        %682 = vmatpush1.msra.mxu0 %v365
        %683 = vmatprep.subr.mxu0 0.0
        %684 = vmatpush1.msra.mxu0 0.0
        %685 = vmatprep.subr.mxu0 0.0
        %686 = vmatpush1.msra.mxu0 0.0
        %687 = vmatprep.subr.mxu0 0.0
        %688 = vmatpush1.msra.mxu0 0.0
        %689 = vmatprep.subr.mxu0 0.0
        %690 = vmatpush1.msra.mxu0 0.0
        %691 = vmatprep.subr.mxu0 0.0
        %692 = vmatpush1.msra.mxu0 0.0
        %693 = vmatprep.subr.mxu0 0.0
        %694 = vmatpush1.msra.mxu0 0.0
        %695 = vmatprep.subr.mxu0 0.0
        %696 = vmatpush1.msra.mxu0 0.0
        %697 = vmatprep.subr.mxu0 0.0
        %698 = vmatpush1.msra.mxu0 0.0
        %699 = vmatprep.subr.mxu0 0.0
        %700 = vmatpush1.msra.mxu0 0.0
        %701 = vmatprep.subr.mxu0 0.0
        %702 = vmatpush1.msra.mxu0 0.0
        %703 = vmatprep.subr.mxu0 0.0
        %704 = vmatpush1.msra.mxu0 0.0
        %705 = vmatprep.subr.mxu0 0.0
        %706 = vmatpush1.msra.mxu0 0.0
        %707 = vmatprep.subr.mxu0 0.0
        %708 = vmatpush1.msra.mxu0 0.0
        %709 = vmatprep.subr.mxu0 0.0
        %710 = vmatpush1.msra.mxu0 0.0
        %711 = vmatprep.subr.mxu0 0.0
        %712 = vmatpush1.msra.mxu0 0.0
        %713 = vmatprep.subr.mxu0 0.0
        %714 = vmatpush1.msra.mxu0 0.0
        %715 = vmatprep.mubr.f32.mxu0 0.0
        %716 = vmatmul.mubr.f32.gmra.mrb[0].mxu0 %v302
        %v717 = vpop.f32.mrb[0].mxu0
        %v718 = vadd.f32 %v576, %v717
        %v719 = vpop.f32.mrb[0].mxu0
        %v720 = vadd.f32 %v578, %v719
        %721 = vdwg.mxu0
        %722 = vmatprep.subr.mxu0 %v308
        %723 = vmatpush1.msra.mxu0 %v307
        %724 = vmatprep.subr.mxu0 %v312
        %725 = vmatpush1.msra.mxu0 %v311
        %726 = vmatprep.subr.mxu0 %v316
        %727 = vmatpush1.msra.mxu0 %v315
        %728 = vmatprep.subr.mxu0 %v320
        %729 = vmatpush1.msra.mxu0 %v319
        %730 = vmatprep.subr.mxu0 %v324
        %731 = vmatpush1.msra.mxu0 %v323
        %732 = vmatprep.subr.mxu0 %v328
        %733 = vmatpush1.msra.mxu0 %v327
        %734 = vmatprep.subr.mxu0 %v332
        %735 = vmatpush1.msra.mxu0 %v331
        %736 = vmatprep.subr.mxu0 %v336
        %737 = vmatpush1.msra.mxu0 %v335
        %738 = vmatprep.subr.mxu0 %v340
        %739 = vmatpush1.msra.mxu0 %v339
        %740 = vmatprep.subr.mxu0 %v344
        %741 = vmatpush1.msra.mxu0 %v343
        %742 = vmatprep.subr.mxu0 %v348
        %743 = vmatpush1.msra.mxu0 %v347
        %744 = vmatprep.subr.mxu0 %v352
        %745 = vmatpush1.msra.mxu0 %v351
        %746 = vmatprep.subr.mxu0 %v356
        %747 = vmatpush1.msra.mxu0 %v355
        %748 = vmatprep.subr.mxu0 %v360
        %749 = vmatpush1.msra.mxu0 %v359
        %750 = vmatprep.subr.mxu0 %v364
        %751 = vmatpush1.msra.mxu0 %v363
        %752 = vmatprep.subr.mxu0 %v368
        %753 = vmatpush1.msra.mxu0 %v367
        %754 = vmatprep.subr.mxu0 0.0
        %755 = vmatpush1.msra.mxu0 0.0
        %756 = vmatprep.subr.mxu0 0.0
        %757 = vmatpush1.msra.mxu0 0.0
        %758 = vmatprep.subr.mxu0 0.0
        %759 = vmatpush1.msra.mxu0 0.0
        %760 = vmatprep.subr.mxu0 0.0
        %761 = vmatpush1.msra.mxu0 0.0
        %762 = vmatprep.subr.mxu0 0.0
        %763 = vmatpush1.msra.mxu0 0.0
        %764 = vmatprep.subr.mxu0 0.0
        %765 = vmatpush1.msra.mxu0 0.0
        %766 = vmatprep.subr.mxu0 0.0
        %767 = vmatpush1.msra.mxu0 0.0
        %768 = vmatprep.subr.mxu0 0.0
        %769 = vmatpush1.msra.mxu0 0.0
        %770 = vmatprep.subr.mxu0 0.0
        %771 = vmatpush1.msra.mxu0 0.0
        %772 = vmatprep.subr.mxu0 0.0
        %773 = vmatpush1.msra.mxu0 0.0
        %774 = vmatprep.subr.mxu0 0.0
        %775 = vmatpush1.msra.mxu0 0.0
        %776 = vmatprep.subr.mxu0 0.0
        %777 = vmatpush1.msra.mxu0 0.0
        %778 = vmatprep.subr.mxu0 0.0
        %779 = vmatpush1.msra.mxu0 0.0
        %780 = vmatprep.subr.mxu0 0.0
        %781 = vmatpush1.msra.mxu0 0.0
        %782 = vmatprep.subr.mxu0 0.0
        %783 = vmatpush1.msra.mxu0 0.0
        %784 = vmatprep.subr.mxu0 0.0
        %785 = vmatpush1.msra.mxu0 0.0
        %786 = vmatprep.mubr.f32.mxu0 0.0
        %787 = vmatmul.mubr.f32.gmra.mrb[0].mxu0 %v302
        %v788 = vpop.f32.mrb[0].mxu0
        %v789 = vadd.f32 %v647, %v788
        %v790 = vpop.f32.mrb[0].mxu0
        %v791 = vadd.f32 %v649, %v790
        %792 = vdwg.mxu0
        %s793 = scalar_lea.vmem %s0, 16
        %v794 = vld [vmem:[%s793] sm:$0xff]
        %v796 = vsel %vm227, %v794, 0
        %798 = vmatprep.subr.mxu0 0.0
        %799 = vmatpush1.msra.mxu0 %v233
        %800 = vmatprep.subr.mxu0 0.0
        %801 = vmatpush1.msra.mxu0 0.0
        %802 = vmatprep.subr.mxu0 0.0
        %803 = vmatpush1.msra.mxu0 0.0
        %804 = vmatprep.subr.mxu0 0.0
        %805 = vmatpush1.msra.mxu0 0.0
        %806 = vmatprep.subr.mxu0 0.0
        %807 = vmatpush1.msra.mxu0 0.0
        %808 = vmatprep.subr.mxu0 0.0
        %809 = vmatpush1.msra.mxu0 0.0
        %810 = vmatprep.subr.mxu0 0.0
        %811 = vmatpush1.msra.mxu0 0.0
        %812 = vmatprep.subr.mxu0 0.0
        %813 = vmatpush1.msra.mxu0 0.0
        %814 = vmatprep.subr.mxu0 0.0
        %815 = vmatpush1.msra.mxu0 0.0
        %816 = vmatprep.subr.mxu0 0.0
        %817 = vmatpush1.msra.mxu0 0.0
        %818 = vmatprep.subr.mxu0 0.0
        %819 = vmatpush1.msra.mxu0 0.0
        %820 = vmatprep.subr.mxu0 0.0
        %821 = vmatpush1.msra.mxu0 0.0
        %822 = vmatprep.subr.mxu0 0.0
        %823 = vmatpush1.msra.mxu0 0.0
        %824 = vmatprep.subr.mxu0 0.0
        %825 = vmatpush1.msra.mxu0 0.0
        %826 = vmatprep.subr.mxu0 0.0
        %827 = vmatpush1.msra.mxu0 0.0
        %828 = vmatprep.subr.mxu0 0.0
        %829 = vmatpush1.msra.mxu0 0.0
        %830 = vmatprep.subr.mxu0 0.0
        %831 = vmatpush1.msra.mxu0 0.0
        %832 = vmatprep.subr.mxu0 0.0
        %833 = vmatpush1.msra.mxu0 0.0
        %834 = vmatprep.subr.mxu0 0.0
        %835 = vmatpush1.msra.mxu0 0.0
        %836 = vmatprep.subr.mxu0 0.0
        %837 = vmatpush1.msra.mxu0 0.0
        %838 = vmatprep.subr.mxu0 0.0
        %839 = vmatpush1.msra.mxu0 0.0
        %840 = vmatprep.subr.mxu0 0.0
        %841 = vmatpush1.msra.mxu0 0.0
        %842 = vmatprep.subr.mxu0 0.0
        %843 = vmatpush1.msra.mxu0 0.0
        %844 = vmatprep.subr.mxu0 0.0
        %845 = vmatpush1.msra.mxu0 0.0
        %846 = vmatprep.subr.mxu0 0.0
        %847 = vmatpush1.msra.mxu0 0.0
        %848 = vmatprep.subr.mxu0 0.0
        %849 = vmatpush1.msra.mxu0 0.0
        %850 = vmatprep.subr.mxu0 0.0
        %851 = vmatpush1.msra.mxu0 0.0
        %852 = vmatprep.subr.mxu0 0.0
        %853 = vmatpush1.msra.mxu0 0.0
        %854 = vmatprep.subr.mxu0 0.0
        %855 = vmatpush1.msra.mxu0 0.0
        %856 = vmatprep.subr.mxu0 0.0
        %857 = vmatpush1.msra.mxu0 0.0
        %858 = vmatprep.subr.mxu0 0.0
        %859 = vmatpush1.msra.mxu0 0.0
        %860 = vmatprep.subr.mxu0 0.0
        %861 = vmatpush1.msra.mxu0 0.0
        %862 = vmatprep.mubr.f32.mxu0 0.0
        %863 = vmatmul.mubr.f32.gmra.mrb[0].mxu0 %v796
        %v864 = vpop.f32.mrb[0].mxu0
        %v865 = vadd.f32 0.0, %v864
        %v866 = vpop.f32.mrb[0].mxu0
        %867 = vdwg.mxu0
        %s868 = scalar_lea.vmem [#allocation2], 1024
        %v869 = vld [vmem:[%s868] sm:$0xff]
        %v870 = vld [vmem:[%s868 + $0x8] sm:$0xff]
        %v871 = vld [vmem:[%s868 + $0x10] sm:$0xff]
        %v872 = vld [vmem:[%s868 + $0x18] sm:$0xff]
        %v873 = vld [vmem:[%s868 + $0x20] sm:$0xff]
        %v874 = vld [vmem:[%s868 + $0x28] sm:$0xff]
        %v875 = vld [vmem:[%s868 + $0x30] sm:$0xff]
        %v876 = vld [vmem:[%s868 + $0x38] sm:$0xff]
        %v877 = vld [vmem:[%s868 + $0x40] sm:$0xff]
        %v878 = vld [vmem:[%s868 + $0x48] sm:$0xff]
        %v879 = vld [vmem:[%s868 + $0x50] sm:$0xff]
        %v880 = vld [vmem:[%s868 + $0x58] sm:$0xff]
        %v881 = vld [vmem:[%s868 + $0x60] sm:$0xff]
        %v882 = vld [vmem:[%s868 + $0x68] sm:$0xff]
        %v883 = vld [vmem:[%s868 + $0x70] sm:$0xff]
        %v884 = vld [vmem:[%s868 + $0x78] sm:$0xff]
        %v885 = vld [vmem:[%s868 + $0x80] sm:$0xff]
        %v886 = vld [vmem:[%s868 + $0x88] sm:$0xff]
        %v887 = vld [vmem:[%s868 + $0x90] sm:$0xff]
        %v888 = vld [vmem:[%s868 + $0x98] sm:$0xff]
        %v889 = vld [vmem:[%s868 + $0xa0] sm:$0xff]
        %v890 = vld [vmem:[%s868 + $0xa8] sm:$0xff]
        %v891 = vld [vmem:[%s868 + $0xb0] sm:$0xff]
        %v892 = vld [vmem:[%s868 + $0xb8] sm:$0xff]
        %v893 = vld [vmem:[%s868 + $0xc0] sm:$0xff]
        %v894 = vld [vmem:[%s868 + $0xc8] sm:$0xff]
        %v895 = vld [vmem:[%s868 + $0xd0] sm:$0xff]
        %v896 = vld [vmem:[%s868 + $0xd8] sm:$0xff]
        %v897 = vld [vmem:[%s868 + $0xe0] sm:$0xff]
        %v898 = vld [vmem:[%s868 + $0xe8] sm:$0xff]
        %v899 = vld [vmem:[%s868 + $0xf0] sm:$0xff]
        %v900 = vld [vmem:[%s868 + $0xf8] sm:$0xff]
        %v901 = vld [vmem:[%s868 + $0x100] sm:$0xff]
        %v902 = vld [vmem:[%s868 + $0x108] sm:$0xff]
        %v903 = vld [vmem:[%s868 + $0x110] sm:$0xff]
        %v904 = vld [vmem:[%s868 + $0x118] sm:$0xff]
        %v905 = vld [vmem:[%s868 + $0x120] sm:$0xff]
        %v906 = vld [vmem:[%s868 + $0x128] sm:$0xff]
        %v907 = vld [vmem:[%s868 + $0x130] sm:$0xff]
        %v908 = vld [vmem:[%s868 + $0x138] sm:$0xff]
        %v909 = vld [vmem:[%s868 + $0x140] sm:$0xff]
        %v910 = vld [vmem:[%s868 + $0x148] sm:$0xff]
        %v911 = vld [vmem:[%s868 + $0x150] sm:$0xff]
        %v912 = vld [vmem:[%s868 + $0x158] sm:$0xff]
        %v913 = vld [vmem:[%s868 + $0x160] sm:$0xff]
        %v914 = vld [vmem:[%s868 + $0x168] sm:$0xff]
        %v915 = vld [vmem:[%s868 + $0x170] sm:$0xff]
        %v916 = vld [vmem:[%s868 + $0x178] sm:$0xff]
        %v917 = vld [vmem:[%s868 + $0x180] sm:$0xff]
        %v918 = vld [vmem:[%s868 + $0x188] sm:$0xff]
        %v919 = vld [vmem:[%s868 + $0x190] sm:$0xff]
        %v920 = vld [vmem:[%s868 + $0x198] sm:$0xff]
        %v921 = vld [vmem:[%s868 + $0x1a0] sm:$0xff]
        %v922 = vld [vmem:[%s868 + $0x1a8] sm:$0xff]
        %v923 = vld [vmem:[%s868 + $0x1b0] sm:$0xff]
        %v924 = vld [vmem:[%s868 + $0x1b8] sm:$0xff]
        %v925 = vld [vmem:[%s868 + $0x1c0] sm:$0xff]
        %v926 = vld [vmem:[%s868 + $0x1c8] sm:$0xff]
        %v927 = vld [vmem:[%s868 + $0x1d0] sm:$0xff]
        %v928 = vld [vmem:[%s868 + $0x1d8] sm:$0xff]
        %v929 = vld [vmem:[%s868 + $0x1e0] sm:$0xff]
        %v930 = vld [vmem:[%s868 + $0x1e8] sm:$0xff]
        %v931 = vld [vmem:[%s868 + $0x1f0] sm:$0xff]
        %v932 = vld [vmem:[%s868 + $0x1f8] sm:$0xff]
        %933 = vmatprep.subr.mxu0 %v870
        %934 = vmatpush1.msra.mxu0 %v869
        %935 = vmatprep.subr.mxu0 %v874
        %936 = vmatpush1.msra.mxu0 %v873
        %937 = vmatprep.subr.mxu0 %v878
        %938 = vmatpush1.msra.mxu0 %v877
        %939 = vmatprep.subr.mxu0 %v882
        %940 = vmatpush1.msra.mxu0 %v881
        %941 = vmatprep.subr.mxu0 %v886
        %942 = vmatpush1.msra.mxu0 %v885
        %943 = vmatprep.subr.mxu0 %v890
        %944 = vmatpush1.msra.mxu0 %v889
        %945 = vmatprep.subr.mxu0 %v894
        %946 = vmatpush1.msra.mxu0 %v893
        %947 = vmatprep.subr.mxu0 %v898
        %948 = vmatpush1.msra.mxu0 %v897
        %949 = vmatprep.subr.mxu0 %v902
        %950 = vmatpush1.msra.mxu0 %v901
        %951 = vmatprep.subr.mxu0 %v906
        %952 = vmatpush1.msra.mxu0 %v905
        %953 = vmatprep.subr.mxu0 %v910
        %954 = vmatpush1.msra.mxu0 %v909
        %955 = vmatprep.subr.mxu0 %v914
        %956 = vmatpush1.msra.mxu0 %v913
        %957 = vmatprep.subr.mxu0 %v918
        %958 = vmatpush1.msra.mxu0 %v917
        %959 = vmatprep.subr.mxu0 %v922
        %960 = vmatpush1.msra.mxu0 %v921
        %961 = vmatprep.subr.mxu0 %v926
        %962 = vmatpush1.msra.mxu0 %v925
        %963 = vmatprep.subr.mxu0 %v930
        %964 = vmatpush1.msra.mxu0 %v929
        %965 = vmatprep.subr.mxu0 0.0
        %966 = vmatpush1.msra.mxu0 0.0
        %967 = vmatprep.subr.mxu0 0.0
        %968 = vmatpush1.msra.mxu0 0.0
        %969 = vmatprep.subr.mxu0 0.0
        %970 = vmatpush1.msra.mxu0 0.0
        %971 = vmatprep.subr.mxu0 0.0
        %972 = vmatpush1.msra.mxu0 0.0
        %973 = vmatprep.subr.mxu0 0.0
        %974 = vmatpush1.msra.mxu0 0.0
        %975 = vmatprep.subr.mxu0 0.0
        %976 = vmatpush1.msra.mxu0 0.0
        %977 = vmatprep.subr.mxu0 0.0
        %978 = vmatpush1.msra.mxu0 0.0
        %979 = vmatprep.subr.mxu0 0.0
        %980 = vmatpush1.msra.mxu0 0.0
        %981 = vmatprep.subr.mxu0 0.0
        %982 = vmatpush1.msra.mxu0 0.0
        %983 = vmatprep.subr.mxu0 0.0
        %984 = vmatpush1.msra.mxu0 0.0
        %985 = vmatprep.subr.mxu0 0.0
        %986 = vmatpush1.msra.mxu0 0.0
        %987 = vmatprep.subr.mxu0 0.0
        %988 = vmatpush1.msra.mxu0 0.0
        %989 = vmatprep.subr.mxu0 0.0
        %990 = vmatpush1.msra.mxu0 0.0
        %991 = vmatprep.subr.mxu0 0.0
        %992 = vmatpush1.msra.mxu0 0.0
        %993 = vmatprep.subr.mxu0 0.0
        %994 = vmatpush1.msra.mxu0 0.0
        %995 = vmatprep.subr.mxu0 0.0
        %996 = vmatpush1.msra.mxu0 0.0
        %997 = vmatprep.mubr.f32.mxu0 0.0
        %998 = vmatmul.mubr.f32.gmra.mrb[0].mxu0 %v865
        %v999 = vpop.f32.mrb[0].mxu0
        %v1000 = vadd.f32 0.0, %v999
        %v1001 = vpop.f32.mrb[0].mxu0
        %v1002 = vadd.f32 0.0, %v1001
        %1003 = vdwg.mxu0
        %1004 = vmatprep.subr.mxu0 %v872
        %1005 = vmatpush1.msra.mxu0 %v871
        %1006 = vmatprep.subr.mxu0 %v876
        %1007 = vmatpush1.msra.mxu0 %v875
        %1008 = vmatprep.subr.mxu0 %v880
        %1009 = vmatpush1.msra.mxu0 %v879
        %1010 = vmatprep.subr.mxu0 %v884
        %1011 = vmatpush1.msra.mxu0 %v883
        %1012 = vmatprep.subr.mxu0 %v888
        %1013 = vmatpush1.msra.mxu0 %v887
        %1014 = vmatprep.subr.mxu0 %v892
        %1015 = vmatpush1.msra.mxu0 %v891
        %1016 = vmatprep.subr.mxu0 %v896
        %1017 = vmatpush1.msra.mxu0 %v895
        %1018 = vmatprep.subr.mxu0 %v900
        %1019 = vmatpush1.msra.mxu0 %v899
        %1020 = vmatprep.subr.mxu0 %v904
        %1021 = vmatpush1.msra.mxu0 %v903
        %1022 = vmatprep.subr.mxu0 %v908
        %1023 = vmatpush1.msra.mxu0 %v907
        %1024 = vmatprep.subr.mxu0 %v912
        %1025 = vmatpush1.msra.mxu0 %v911
        %1026 = vmatprep.subr.mxu0 %v916
        %1027 = vmatpush1.msra.mxu0 %v915
        %1028 = vmatprep.subr.mxu0 %v920
        %1029 = vmatpush1.msra.mxu0 %v919
        %1030 = vmatprep.subr.mxu0 %v924
        %1031 = vmatpush1.msra.mxu0 %v923
        %1032 = vmatprep.subr.mxu0 %v928
        %1033 = vmatpush1.msra.mxu0 %v927
        %1034 = vmatprep.subr.mxu0 %v932
        %1035 = vmatpush1.msra.mxu0 %v931
        %1036 = vmatprep.subr.mxu0 0.0
        %1037 = vmatpush1.msra.mxu0 0.0
        %1038 = vmatprep.subr.mxu0 0.0
        %1039 = vmatpush1.msra.mxu0 0.0
        %1040 = vmatprep.subr.mxu0 0.0
        %1041 = vmatpush1.msra.mxu0 0.0
        %1042 = vmatprep.subr.mxu0 0.0
        %1043 = vmatpush1.msra.mxu0 0.0
        %1044 = vmatprep.subr.mxu0 0.0
        %1045 = vmatpush1.msra.mxu0 0.0
        %1046 = vmatprep.subr.mxu0 0.0
        %1047 = vmatpush1.msra.mxu0 0.0
        %1048 = vmatprep.subr.mxu0 0.0
        %1049 = vmatpush1.msra.mxu0 0.0
        %1050 = vmatprep.subr.mxu0 0.0
        %1051 = vmatpush1.msra.mxu0 0.0
        %1052 = vmatprep.subr.mxu0 0.0
        %1053 = vmatpush1.msra.mxu0 0.0
        %1054 = vmatprep.subr.mxu0 0.0
        %1055 = vmatpush1.msra.mxu0 0.0
        %1056 = vmatprep.subr.mxu0 0.0
        %1057 = vmatpush1.msra.mxu0 0.0
        %1058 = vmatprep.subr.mxu0 0.0
        %1059 = vmatpush1.msra.mxu0 0.0
        %1060 = vmatprep.subr.mxu0 0.0
        %1061 = vmatpush1.msra.mxu0 0.0
        %1062 = vmatprep.subr.mxu0 0.0
        %1063 = vmatpush1.msra.mxu0 0.0
        %1064 = vmatprep.subr.mxu0 0.0
        %1065 = vmatpush1.msra.mxu0 0.0
        %1066 = vmatprep.subr.mxu0 0.0
        %1067 = vmatpush1.msra.mxu0 0.0
        %1068 = vmatprep.mubr.f32.mxu0 0.0
        %1069 = vmatmul.mubr.f32.gmra.mrb[0].mxu0 %v865
        %v1070 = vpop.f32.mrb[0].mxu0
        %v1071 = vadd.f32 0.0, %v1070
        %v1072 = vpop.f32.mrb[0].mxu0
        %v1073 = vadd.f32 0.0, %v1072
        %1074 = vdwg.mxu0
        %v1075 = vadd.f32 %v718, %v1000
        %v1076 = vadd.f32 %v720, %v1002
        %v1077 = vadd.f32 %v789, %v1071
        %v1078 = vadd.f32 %v791, %v1073
        %s1079 = scalar_lea.vmem %s0, 24
        %v1080 = vld [vmem:[%s1079] sm:$0xff]
        %v1082 = vsel %vm227, %v1080, 0
        %1084 = vmatprep.subr.mxu0 0.0
        %1085 = vmatpush1.msra.mxu0 %v233
        %1086 = vmatprep.subr.mxu0 0.0
        %1087 = vmatpush1.msra.mxu0 0.0
        %1088 = vmatprep.subr.mxu0 0.0
        %1089 = vmatpush1.msra.mxu0 0.0
        %1090 = vmatprep.subr.mxu0 0.0
        %1091 = vmatpush1.msra.mxu0 0.0
        %1092 = vmatprep.subr.mxu0 0.0
        %1093 = vmatpush1.msra.mxu0 0.0
        %1094 = vmatprep.subr.mxu0 0.0
        %1095 = vmatpush1.msra.mxu0 0.0
        %1096 = vmatprep.subr.mxu0 0.0
        %1097 = vmatpush1.msra.mxu0 0.0
        %1098 = vmatprep.subr.mxu0 0.0
        %1099 = vmatpush1.msra.mxu0 0.0
        %1100 = vmatprep.subr.mxu0 0.0
        %1101 = vmatpush1.msra.mxu0 0.0
        %1102 = vmatprep.subr.mxu0 0.0
        %1103 = vmatpush1.msra.mxu0 0.0
        %1104 = vmatprep.subr.mxu0 0.0
        %1105 = vmatpush1.msra.mxu0 0.0
        %1106 = vmatprep.subr.mxu0 0.0
        %1107 = vmatpush1.msra.mxu0 0.0
        %1108 = vmatprep.subr.mxu0 0.0
        %1109 = vmatpush1.msra.mxu0 0.0
        %1110 = vmatprep.subr.mxu0 0.0
        %1111 = vmatpush1.msra.mxu0 0.0
        %1112 = vmatprep.subr.mxu0 0.0
        %1113 = vmatpush1.msra.mxu0 0.0
        %1114 = vmatprep.subr.mxu0 0.0
        %1115 = vmatpush1.msra.mxu0 0.0
        %1116 = vmatprep.subr.mxu0 0.0
        %1117 = vmatpush1.msra.mxu0 0.0
        %1118 = vmatprep.subr.mxu0 0.0
        %1119 = vmatpush1.msra.mxu0 0.0
        %1120 = vmatprep.subr.mxu0 0.0
        %1121 = vmatpush1.msra.mxu0 0.0
        %1122 = vmatprep.subr.mxu0 0.0
        %1123 = vmatpush1.msra.mxu0 0.0
        %1124 = vmatprep.subr.mxu0 0.0
        %1125 = vmatpush1.msra.mxu0 0.0
        %1126 = vmatprep.subr.mxu0 0.0
        %1127 = vmatpush1.msra.mxu0 0.0
        %1128 = vmatprep.subr.mxu0 0.0
        %1129 = vmatpush1.msra.mxu0 0.0
        %1130 = vmatprep.subr.mxu0 0.0
        %1131 = vmatpush1.msra.mxu0 0.0
        %1132 = vmatprep.subr.mxu0 0.0
        %1133 = vmatpush1.msra.mxu0 0.0
        %1134 = vmatprep.subr.mxu0 0.0
        %1135 = vmatpush1.msra.mxu0 0.0
        %1136 = vmatprep.subr.mxu0 0.0
        %1137 = vmatpush1.msra.mxu0 0.0
        %1138 = vmatprep.subr.mxu0 0.0
        %1139 = vmatpush1.msra.mxu0 0.0
        %1140 = vmatprep.subr.mxu0 0.0
        %1141 = vmatpush1.msra.mxu0 0.0
        %1142 = vmatprep.subr.mxu0 0.0
        %1143 = vmatpush1.msra.mxu0 0.0
        %1144 = vmatprep.subr.mxu0 0.0
        %1145 = vmatpush1.msra.mxu0 0.0
        %1146 = vmatprep.subr.mxu0 0.0
        %1147 = vmatpush1.msra.mxu0 0.0
        %1148 = vmatprep.mubr.f32.mxu0 0.0
        %1149 = vmatmul.mubr.f32.gmra.mrb[0].mxu0 %v1082
        %v1150 = vpop.f32.mrb[0].mxu0
        %v1151 = vadd.f32 0.0, %v1150
        %v1152 = vpop.f32.mrb[0].mxu0
        %1153 = vdwg.mxu0
        %s1154 = scalar_lea.vmem [#allocation2], 1536
        %v1155 = vld [vmem:[%s1154] sm:$0xff]
        %v1156 = vld [vmem:[%s1154 + $0x8] sm:$0xff]
        %v1157 = vld [vmem:[%s1154 + $0x10] sm:$0xff]
        %v1158 = vld [vmem:[%s1154 + $0x18] sm:$0xff]
        %v1159 = vld [vmem:[%s1154 + $0x20] sm:$0xff]
        %v1160 = vld [vmem:[%s1154 + $0x28] sm:$0xff]
        %v1161 = vld [vmem:[%s1154 + $0x30] sm:$0xff]
        %v1162 = vld [vmem:[%s1154 + $0x38] sm:$0xff]
        %v1163 = vld [vmem:[%s1154 + $0x40] sm:$0xff]
        %v1164 = vld [vmem:[%s1154 + $0x48] sm:$0xff]
        %v1165 = vld [vmem:[%s1154 + $0x50] sm:$0xff]
        %v1166 = vld [vmem:[%s1154 + $0x58] sm:$0xff]
        %v1167 = vld [vmem:[%s1154 + $0x60] sm:$0xff]
        %v1168 = vld [vmem:[%s1154 + $0x68] sm:$0xff]
        %v1169 = vld [vmem:[%s1154 + $0x70] sm:$0xff]
        %v1170 = vld [vmem:[%s1154 + $0x78] sm:$0xff]
        %v1171 = vld [vmem:[%s1154 + $0x80] sm:$0xff]
        %v1172 = vld [vmem:[%s1154 + $0x88] sm:$0xff]
        %v1173 = vld [vmem:[%s1154 + $0x90] sm:$0xff]
        %v1174 = vld [vmem:[%s1154 + $0x98] sm:$0xff]
        %v1175 = vld [vmem:[%s1154 + $0xa0] sm:$0xff]
        %v1176 = vld [vmem:[%s1154 + $0xa8] sm:$0xff]
        %v1177 = vld [vmem:[%s1154 + $0xb0] sm:$0xff]
        %v1178 = vld [vmem:[%s1154 + $0xb8] sm:$0xff]
        %v1179 = vld [vmem:[%s1154 + $0xc0] sm:$0xff]
        %v1180 = vld [vmem:[%s1154 + $0xc8] sm:$0xff]
        %v1181 = vld [vmem:[%s1154 + $0xd0] sm:$0xff]
        %v1182 = vld [vmem:[%s1154 + $0xd8] sm:$0xff]
        %v1183 = vld [vmem:[%s1154 + $0xe0] sm:$0xff]
        %v1184 = vld [vmem:[%s1154 + $0xe8] sm:$0xff]
        %v1185 = vld [vmem:[%s1154 + $0xf0] sm:$0xff]
        %v1186 = vld [vmem:[%s1154 + $0xf8] sm:$0xff]
        %v1187 = vld [vmem:[%s1154 + $0x100] sm:$0xff]
        %v1188 = vld [vmem:[%s1154 + $0x108] sm:$0xff]
        %v1189 = vld [vmem:[%s1154 + $0x110] sm:$0xff]
        %v1190 = vld [vmem:[%s1154 + $0x118] sm:$0xff]
        %v1191 = vld [vmem:[%s1154 + $0x120] sm:$0xff]
        %v1192 = vld [vmem:[%s1154 + $0x128] sm:$0xff]
        %v1193 = vld [vmem:[%s1154 + $0x130] sm:$0xff]
        %v1194 = vld [vmem:[%s1154 + $0x138] sm:$0xff]
        %v1195 = vld [vmem:[%s1154 + $0x140] sm:$0xff]
        %v1196 = vld [vmem:[%s1154 + $0x148] sm:$0xff]
        %v1197 = vld [vmem:[%s1154 + $0x150] sm:$0xff]
        %v1198 = vld [vmem:[%s1154 + $0x158] sm:$0xff]
        %v1199 = vld [vmem:[%s1154 + $0x160] sm:$0xff]
        %v1200 = vld [vmem:[%s1154 + $0x168] sm:$0xff]
        %v1201 = vld [vmem:[%s1154 + $0x170] sm:$0xff]
        %v1202 = vld [vmem:[%s1154 + $0x178] sm:$0xff]
        %v1203 = vld [vmem:[%s1154 + $0x180] sm:$0xff]
        %v1204 = vld [vmem:[%s1154 + $0x188] sm:$0xff]
        %v1205 = vld [vmem:[%s1154 + $0x190] sm:$0xff]
        %v1206 = vld [vmem:[%s1154 + $0x198] sm:$0xff]
        %v1207 = vld [vmem:[%s1154 + $0x1a0] sm:$0xff]
        %v1208 = vld [vmem:[%s1154 + $0x1a8] sm:$0xff]
        %v1209 = vld [vmem:[%s1154 + $0x1b0] sm:$0xff]
        %v1210 = vld [vmem:[%s1154 + $0x1b8] sm:$0xff]
        %v1211 = vld [vmem:[%s1154 + $0x1c0] sm:$0xff]
        %v1212 = vld [vmem:[%s1154 + $0x1c8] sm:$0xff]
        %v1213 = vld [vmem:[%s1154 + $0x1d0] sm:$0xff]
        %v1214 = vld [vmem:[%s1154 + $0x1d8] sm:$0xff]
        %v1215 = vld [vmem:[%s1154 + $0x1e0] sm:$0xff]
        %v1216 = vld [vmem:[%s1154 + $0x1e8] sm:$0xff]
        %v1217 = vld [vmem:[%s1154 + $0x1f0] sm:$0xff]
        %v1218 = vld [vmem:[%s1154 + $0x1f8] sm:$0xff]
        %1219 = vmatprep.subr.mxu0 %v1156
        %1220 = vmatpush1.msra.mxu0 %v1155
        %1221 = vmatprep.subr.mxu0 %v1160
        %1222 = vmatpush1.msra.mxu0 %v1159
        %1223 = vmatprep.subr.mxu0 %v1164
        %1224 = vmatpush1.msra.mxu0 %v1163
        %1225 = vmatprep.subr.mxu0 %v1168
        %1226 = vmatpush1.msra.mxu0 %v1167
        %1227 = vmatprep.subr.mxu0 %v1172
        %1228 = vmatpush1.msra.mxu0 %v1171
        %1229 = vmatprep.subr.mxu0 %v1176
        %1230 = vmatpush1.msra.mxu0 %v1175
        %1231 = vmatprep.subr.mxu0 %v1180
        %1232 = vmatpush1.msra.mxu0 %v1179
        %1233 = vmatprep.subr.mxu0 %v1184
        %1234 = vmatpush1.msra.mxu0 %v1183
        %1235 = vmatprep.subr.mxu0 %v1188
        %1236 = vmatpush1.msra.mxu0 %v1187
        %1237 = vmatprep.subr.mxu0 %v1192
        %1238 = vmatpush1.msra.mxu0 %v1191
        %1239 = vmatprep.subr.mxu0 %v1196
        %1240 = vmatpush1.msra.mxu0 %v1195
        %1241 = vmatprep.subr.mxu0 %v1200
        %1242 = vmatpush1.msra.mxu0 %v1199
        %1243 = vmatprep.subr.mxu0 %v1204
        %1244 = vmatpush1.msra.mxu0 %v1203
        %1245 = vmatprep.subr.mxu0 %v1208
        %1246 = vmatpush1.msra.mxu0 %v1207
        %1247 = vmatprep.subr.mxu0 %v1212
        %1248 = vmatpush1.msra.mxu0 %v1211
        %1249 = vmatprep.subr.mxu0 %v1216
        %1250 = vmatpush1.msra.mxu0 %v1215
        %1251 = vmatprep.subr.mxu0 0.0
        %1252 = vmatpush1.msra.mxu0 0.0
        %1253 = vmatprep.subr.mxu0 0.0
        %1254 = vmatpush1.msra.mxu0 0.0
        %1255 = vmatprep.subr.mxu0 0.0
        %1256 = vmatpush1.msra.mxu0 0.0
        %1257 = vmatprep.subr.mxu0 0.0
        %1258 = vmatpush1.msra.mxu0 0.0
        %1259 = vmatprep.subr.mxu0 0.0
        %1260 = vmatpush1.msra.mxu0 0.0
        %1261 = vmatprep.subr.mxu0 0.0
        %1262 = vmatpush1.msra.mxu0 0.0
        %1263 = vmatprep.subr.mxu0 0.0
        %1264 = vmatpush1.msra.mxu0 0.0
        %1265 = vmatprep.subr.mxu0 0.0
        %1266 = vmatpush1.msra.mxu0 0.0
        %1267 = vmatprep.subr.mxu0 0.0
        %1268 = vmatpush1.msra.mxu0 0.0
        %1269 = vmatprep.subr.mxu0 0.0
        %1270 = vmatpush1.msra.mxu0 0.0
        %1271 = vmatprep.subr.mxu0 0.0
        %1272 = vmatpush1.msra.mxu0 0.0
        %1273 = vmatprep.subr.mxu0 0.0
        %1274 = vmatpush1.msra.mxu0 0.0
        %1275 = vmatprep.subr.mxu0 0.0
        %1276 = vmatpush1.msra.mxu0 0.0
        %1277 = vmatprep.subr.mxu0 0.0
        %1278 = vmatpush1.msra.mxu0 0.0
        %1279 = vmatprep.subr.mxu0 0.0
        %1280 = vmatpush1.msra.mxu0 0.0
        %1281 = vmatprep.subr.mxu0 0.0
        %1282 = vmatpush1.msra.mxu0 0.0
        %1283 = vmatprep.mubr.f32.mxu0 0.0
        %1284 = vmatmul.mubr.f32.gmra.mrb[0].mxu0 %v1151
        %v1285 = vpop.f32.mrb[0].mxu0
        %v1286 = vadd.f32 0.0, %v1285
        %v1287 = vpop.f32.mrb[0].mxu0
        %v1288 = vadd.f32 0.0, %v1287
        %1289 = vdwg.mxu0
        %1290 = vmatprep.subr.mxu0 %v1158
        %1291 = vmatpush1.msra.mxu0 %v1157
        %1292 = vmatprep.subr.mxu0 %v1162
        %1293 = vmatpush1.msra.mxu0 %v1161
        %1294 = vmatprep.subr.mxu0 %v1166
        %1295 = vmatpush1.msra.mxu0 %v1165
        %1296 = vmatprep.subr.mxu0 %v1170
        %1297 = vmatpush1.msra.mxu0 %v1169
        %1298 = vmatprep.subr.mxu0 %v1174
        %1299 = vmatpush1.msra.mxu0 %v1173
        %1300 = vmatprep.subr.mxu0 %v1178
        %1301 = vmatpush1.msra.mxu0 %v1177
        %1302 = vmatprep.subr.mxu0 %v1182
        %1303 = vmatpush1.msra.mxu0 %v1181
        %1304 = vmatprep.subr.mxu0 %v1186
        %1305 = vmatpush1.msra.mxu0 %v1185
        %1306 = vmatprep.subr.mxu0 %v1190
        %1307 = vmatpush1.msra.mxu0 %v1189
        %1308 = vmatprep.subr.mxu0 %v1194
        %1309 = vmatpush1.msra.mxu0 %v1193
        %1310 = vmatprep.subr.mxu0 %v1198
        %1311 = vmatpush1.msra.mxu0 %v1197
        %1312 = vmatprep.subr.mxu0 %v1202
        %1313 = vmatpush1.msra.mxu0 %v1201
        %1314 = vmatprep.subr.mxu0 %v1206
        %1315 = vmatpush1.msra.mxu0 %v1205
        %1316 = vmatprep.subr.mxu0 %v1210
        %1317 = vmatpush1.msra.mxu0 %v1209
        %1318 = vmatprep.subr.mxu0 %v1214
        %1319 = vmatpush1.msra.mxu0 %v1213
        %1320 = vmatprep.subr.mxu0 %v1218
        %1321 = vmatpush1.msra.mxu0 %v1217
        %1322 = vmatprep.subr.mxu0 0.0
        %1323 = vmatpush1.msra.mxu0 0.0
        %1324 = vmatprep.subr.mxu0 0.0
        %1325 = vmatpush1.msra.mxu0 0.0
        %1326 = vmatprep.subr.mxu0 0.0
        %1327 = vmatpush1.msra.mxu0 0.0
        %1328 = vmatprep.subr.mxu0 0.0
        %1329 = vmatpush1.msra.mxu0 0.0
        %1330 = vmatprep.subr.mxu0 0.0
        %1331 = vmatpush1.msra.mxu0 0.0
        %1332 = vmatprep.subr.mxu0 0.0
        %1333 = vmatpush1.msra.mxu0 0.0
        %1334 = vmatprep.subr.mxu0 0.0
        %1335 = vmatpush1.msra.mxu0 0.0
        %1336 = vmatprep.subr.mxu0 0.0
        %1337 = vmatpush1.msra.mxu0 0.0
        %1338 = vmatprep.subr.mxu0 0.0
        %1339 = vmatpush1.msra.mxu0 0.0
        %1340 = vmatprep.subr.mxu0 0.0
        %1341 = vmatpush1.msra.mxu0 0.0
        %1342 = vmatprep.subr.mxu0 0.0
        %1343 = vmatpush1.msra.mxu0 0.0
        %1344 = vmatprep.subr.mxu0 0.0
        %1345 = vmatpush1.msra.mxu0 0.0
        %1346 = vmatprep.subr.mxu0 0.0
        %1347 = vmatpush1.msra.mxu0 0.0
        %1348 = vmatprep.subr.mxu0 0.0
        %1349 = vmatpush1.msra.mxu0 0.0
        %1350 = vmatprep.subr.mxu0 0.0
        %1351 = vmatpush1.msra.mxu0 0.0
        %1352 = vmatprep.subr.mxu0 0.0
        %1353 = vmatpush1.msra.mxu0 0.0
        %1354 = vmatprep.mubr.f32.mxu0 0.0
        %1355 = vmatmul.mubr.f32.gmra.mrb[0].mxu0 %v1151
        %v1356 = vpop.f32.mrb[0].mxu0
        %v1357 = vadd.f32 0.0, %v1356
        %v1358 = vpop.f32.mrb[0].mxu0
        %v1359 = vadd.f32 0.0, %v1358
        %1360 = vdwg.mxu0
        %v1361 = vadd.f32 %v1075, %v1286
        %v1362 = vadd.f32 %v1076, %v1288
        %v1363 = vadd.f32 %v1077, %v1357
        %v1364 = vadd.f32 %v1078, %v1359
        %1365 = vst [vmem:[%s223] sm:$0xff] %v1361
        %1366 = vst [vmem:[%s223 + $0x8] sm:$0xff] %v1362
        %1367 = vst [vmem:[%s223 + $0x10] sm:$0xff] %v1363
        %1368 = vst [vmem:[%s223 + $0x18] sm:$0xff] %v1364
        %v1369 = vld [vmem:[%s213 + $0x4] sm:$0xf]
        %v1370 = vld [vmem:[%s0] sm:$0xff]
        %v1372 = vsel %vm227, %v1370, 0
        %v1375 = vsel %vm231, %v1369, 0
        %1377 = vmatprep.subr.mxu0 0.0
        %1378 = vmatpush1.msra.mxu0 %v1375
        %1379 = vmatprep.subr.mxu0 0.0
        %1380 = vmatpush1.msra.mxu0 0.0
        %1381 = vmatprep.subr.mxu0 0.0
        %1382 = vmatpush1.msra.mxu0 0.0
        %1383 = vmatprep.subr.mxu0 0.0
        %1384 = vmatpush1.msra.mxu0 0.0
        %1385 = vmatprep.subr.mxu0 0.0
        %1386 = vmatpush1.msra.mxu0 0.0
        %1387 = vmatprep.subr.mxu0 0.0
        %1388 = vmatpush1.msra.mxu0 0.0
        %1389 = vmatprep.subr.mxu0 0.0
        %1390 = vmatpush1.msra.mxu0 0.0
        %1391 = vmatprep.subr.mxu0 0.0
        %1392 = vmatpush1.msra.mxu0 0.0
        %1393 = vmatprep.subr.mxu0 0.0
        %1394 = vmatpush1.msra.mxu0 0.0
        %1395 = vmatprep.subr.mxu0 0.0
        %1396 = vmatpush1.msra.mxu0 0.0
        %1397 = vmatprep.subr.mxu0 0.0
        %1398 = vmatpush1.msra.mxu0 0.0
        %1399 = vmatprep.subr.mxu0 0.0
        %1400 = vmatpush1.msra.mxu0 0.0
        %1401 = vmatprep.subr.mxu0 0.0
        %1402 = vmatpush1.msra.mxu0 0.0
        %1403 = vmatprep.subr.mxu0 0.0
        %1404 = vmatpush1.msra.mxu0 0.0
        %1405 = vmatprep.subr.mxu0 0.0
        %1406 = vmatpush1.msra.mxu0 0.0
        %1407 = vmatprep.subr.mxu0 0.0
        %1408 = vmatpush1.msra.mxu0 0.0
        %1409 = vmatprep.subr.mxu0 0.0
        %1410 = vmatpush1.msra.mxu0 0.0
        %1411 = vmatprep.subr.mxu0 0.0
        %1412 = vmatpush1.msra.mxu0 0.0
        %1413 = vmatprep.subr.mxu0 0.0
        %1414 = vmatpush1.msra.mxu0 0.0
        %1415 = vmatprep.subr.mxu0 0.0
        %1416 = vmatpush1.msra.mxu0 0.0
        %1417 = vmatprep.subr.mxu0 0.0
        %1418 = vmatpush1.msra.mxu0 0.0
        %1419 = vmatprep.subr.mxu0 0.0
        %1420 = vmatpush1.msra.mxu0 0.0
        %1421 = vmatprep.subr.mxu0 0.0
        %1422 = vmatpush1.msra.mxu0 0.0
        %1423 = vmatprep.subr.mxu0 0.0
        %1424 = vmatpush1.msra.mxu0 0.0
        %1425 = vmatprep.subr.mxu0 0.0
        %1426 = vmatpush1.msra.mxu0 0.0
        %1427 = vmatprep.subr.mxu0 0.0
        %1428 = vmatpush1.msra.mxu0 0.0
        %1429 = vmatprep.subr.mxu0 0.0
        %1430 = vmatpush1.msra.mxu0 0.0
        %1431 = vmatprep.subr.mxu0 0.0
        %1432 = vmatpush1.msra.mxu0 0.0
        %1433 = vmatprep.subr.mxu0 0.0
        %1434 = vmatpush1.msra.mxu0 0.0
        %1435 = vmatprep.subr.mxu0 0.0
        %1436 = vmatpush1.msra.mxu0 0.0
        %1437 = vmatprep.subr.mxu0 0.0
        %1438 = vmatpush1.msra.mxu0 0.0
        %1439 = vmatprep.subr.mxu0 0.0
        %1440 = vmatpush1.msra.mxu0 0.0
        %1441 = vmatprep.mubr.f32.mxu0 0.0
        %1442 = vmatmul.mubr.f32.gmra.mrb[0].mxu0 %v1372
        %v1443 = vpop.f32.mrb[0].mxu0
        %v1444 = vadd.f32 0.0, %v1443
        %v1445 = vpop.f32.mrb[0].mxu0
        %1446 = vdwg.mxu0
        %v1447 = vld [vmem:[#allocation2] sm:$0xff]
        %v1448 = vld [vmem:[#allocation2 + $0x8] sm:$0xff]
        %v1449 = vld [vmem:[#allocation2 + $0x10] sm:$0xff]
        %v1450 = vld [vmem:[#allocation2 + $0x18] sm:$0xff]
        %v1451 = vld [vmem:[#allocation2 + $0x20] sm:$0xff]
        %v1452 = vld [vmem:[#allocation2 + $0x28] sm:$0xff]
        %v1453 = vld [vmem:[#allocation2 + $0x30] sm:$0xff]
        %v1454 = vld [vmem:[#allocation2 + $0x38] sm:$0xff]
        %v1455 = vld [vmem:[#allocation2 + $0x40] sm:$0xff]
        %v1456 = vld [vmem:[#allocation2 + $0x48] sm:$0xff]
        %v1457 = vld [vmem:[#allocation2 + $0x50] sm:$0xff]
        %v1458 = vld [vmem:[#allocation2 + $0x58] sm:$0xff]
        %v1459 = vld [vmem:[#allocation2 + $0x60] sm:$0xff]
        %v1460 = vld [vmem:[#allocation2 + $0x68] sm:$0xff]
        %v1461 = vld [vmem:[#allocation2 + $0x70] sm:$0xff]
        %v1462 = vld [vmem:[#allocation2 + $0x78] sm:$0xff]
        %v1463 = vld [vmem:[#allocation2 + $0x80] sm:$0xff]
        %v1464 = vld [vmem:[#allocation2 + $0x88] sm:$0xff]
        %v1465 = vld [vmem:[#allocation2 + $0x90] sm:$0xff]
        %v1466 = vld [vmem:[#allocation2 + $0x98] sm:$0xff]
        %v1467 = vld [vmem:[#allocation2 + $0xa0] sm:$0xff]
        %v1468 = vld [vmem:[#allocation2 + $0xa8] sm:$0xff]
        %v1469 = vld [vmem:[#allocation2 + $0xb0] sm:$0xff]
        %v1470 = vld [vmem:[#allocation2 + $0xb8] sm:$0xff]
        %v1471 = vld [vmem:[#allocation2 + $0xc0] sm:$0xff]
        %v1472 = vld [vmem:[#allocation2 + $0xc8] sm:$0xff]
        %v1473 = vld [vmem:[#allocation2 + $0xd0] sm:$0xff]
        %v1474 = vld [vmem:[#allocation2 + $0xd8] sm:$0xff]
        %v1475 = vld [vmem:[#allocation2 + $0xe0] sm:$0xff]
        %v1476 = vld [vmem:[#allocation2 + $0xe8] sm:$0xff]
        %v1477 = vld [vmem:[#allocation2 + $0xf0] sm:$0xff]
        %v1478 = vld [vmem:[#allocation2 + $0xf8] sm:$0xff]
        %v1479 = vld [vmem:[#allocation2 + $0x100] sm:$0xff]
        %v1480 = vld [vmem:[#allocation2 + $0x108] sm:$0xff]
        %v1481 = vld [vmem:[#allocation2 + $0x110] sm:$0xff]
        %v1482 = vld [vmem:[#allocation2 + $0x118] sm:$0xff]
        %v1483 = vld [vmem:[#allocation2 + $0x120] sm:$0xff]
        %v1484 = vld [vmem:[#allocation2 + $0x128] sm:$0xff]
        %v1485 = vld [vmem:[#allocation2 + $0x130] sm:$0xff]
        %v1486 = vld [vmem:[#allocation2 + $0x138] sm:$0xff]
        %v1487 = vld [vmem:[#allocation2 + $0x140] sm:$0xff]
        %v1488 = vld [vmem:[#allocation2 + $0x148] sm:$0xff]
        %v1489 = vld [vmem:[#allocation2 + $0x150] sm:$0xff]
        %v1490 = vld [vmem:[#allocation2 + $0x158] sm:$0xff]
        %v1491 = vld [vmem:[#allocation2 + $0x160] sm:$0xff]
        %v1492 = vld [vmem:[#allocation2 + $0x168] sm:$0xff]
        %v1493 = vld [vmem:[#allocation2 + $0x170] sm:$0xff]
        %v1494 = vld [vmem:[#allocation2 + $0x178] sm:$0xff]
        %v1495 = vld [vmem:[#allocation2 + $0x180] sm:$0xff]
        %v1496 = vld [vmem:[#allocation2 + $0x188] sm:$0xff]
        %v1497 = vld [vmem:[#allocation2 + $0x190] sm:$0xff]
        %v1498 = vld [vmem:[#allocation2 + $0x198] sm:$0xff]
        %v1499 = vld [vmem:[#allocation2 + $0x1a0] sm:$0xff]
        %v1500 = vld [vmem:[#allocation2 + $0x1a8] sm:$0xff]
        %v1501 = vld [vmem:[#allocation2 + $0x1b0] sm:$0xff]
        %v1502 = vld [vmem:[#allocation2 + $0x1b8] sm:$0xff]
        %v1503 = vld [vmem:[#allocation2 + $0x1c0] sm:$0xff]
        %v1504 = vld [vmem:[#allocation2 + $0x1c8] sm:$0xff]
        %v1505 = vld [vmem:[#allocation2 + $0x1d0] sm:$0xff]
        %v1506 = vld [vmem:[#allocation2 + $0x1d8] sm:$0xff]
        %v1507 = vld [vmem:[#allocation2 + $0x1e0] sm:$0xff]
        %v1508 = vld [vmem:[#allocation2 + $0x1e8] sm:$0xff]
        %v1509 = vld [vmem:[#allocation2 + $0x1f0] sm:$0xff]
        %v1510 = vld [vmem:[#allocation2 + $0x1f8] sm:$0xff]
        %v1511 = vld [vmem:[%s369] sm:$0xff]
        %v1513 = vsel %vm227, %v1511, 0
        %1515 = vmatprep.subr.mxu0 0.0
        %1516 = vmatpush1.msra.mxu0 %v1375
        %1517 = vmatprep.subr.mxu0 0.0
        %1518 = vmatpush1.msra.mxu0 0.0
        %1519 = vmatprep.subr.mxu0 0.0
        %1520 = vmatpush1.msra.mxu0 0.0
        %1521 = vmatprep.subr.mxu0 0.0
        %1522 = vmatpush1.msra.mxu0 0.0
        %1523 = vmatprep.subr.mxu0 0.0
        %1524 = vmatpush1.msra.mxu0 0.0
        %1525 = vmatprep.subr.mxu0 0.0
        %1526 = vmatpush1.msra.mxu0 0.0
        %1527 = vmatprep.subr.mxu0 0.0
        %1528 = vmatpush1.msra.mxu0 0.0
        %1529 = vmatprep.subr.mxu0 0.0
        %1530 = vmatpush1.msra.mxu0 0.0
        %1531 = vmatprep.subr.mxu0 0.0
        %1532 = vmatpush1.msra.mxu0 0.0
        %1533 = vmatprep.subr.mxu0 0.0
        %1534 = vmatpush1.msra.mxu0 0.0
        %1535 = vmatprep.subr.mxu0 0.0
        %1536 = vmatpush1.msra.mxu0 0.0
        %1537 = vmatprep.subr.mxu0 0.0
        %1538 = vmatpush1.msra.mxu0 0.0
        %1539 = vmatprep.subr.mxu0 0.0
        %1540 = vmatpush1.msra.mxu0 0.0
        %1541 = vmatprep.subr.mxu0 0.0
        %1542 = vmatpush1.msra.mxu0 0.0
        %1543 = vmatprep.subr.mxu0 0.0
        %1544 = vmatpush1.msra.mxu0 0.0
        %1545 = vmatprep.subr.mxu0 0.0
        %1546 = vmatpush1.msra.mxu0 0.0
        %1547 = vmatprep.subr.mxu0 0.0
        %1548 = vmatpush1.msra.mxu0 0.0
        %1549 = vmatprep.subr.mxu0 0.0
        %1550 = vmatpush1.msra.mxu0 0.0
        %1551 = vmatprep.subr.mxu0 0.0
        %1552 = vmatpush1.msra.mxu0 0.0
        %1553 = vmatprep.subr.mxu0 0.0
        %1554 = vmatpush1.msra.mxu0 0.0
        %1555 = vmatprep.subr.mxu0 0.0
        %1556 = vmatpush1.msra.mxu0 0.0
        %1557 = vmatprep.subr.mxu0 0.0
        %1558 = vmatpush1.msra.mxu0 0.0
        %1559 = vmatprep.subr.mxu0 0.0
        %1560 = vmatpush1.msra.mxu0 0.0
        %1561 = vmatprep.subr.mxu0 0.0
        %1562 = vmatpush1.msra.mxu0 0.0
        %1563 = vmatprep.subr.mxu0 0.0
        %1564 = vmatpush1.msra.mxu0 0.0
        %1565 = vmatprep.subr.mxu0 0.0
        %1566 = vmatpush1.msra.mxu0 0.0
        %1567 = vmatprep.subr.mxu0 0.0
        %1568 = vmatpush1.msra.mxu0 0.0
        %1569 = vmatprep.subr.mxu0 0.0
        %1570 = vmatpush1.msra.mxu0 0.0
        %1571 = vmatprep.subr.mxu0 0.0
        %1572 = vmatpush1.msra.mxu0 0.0
        %1573 = vmatprep.subr.mxu0 0.0
        %1574 = vmatpush1.msra.mxu0 0.0
        %1575 = vmatprep.subr.mxu0 0.0
        %1576 = vmatpush1.msra.mxu0 0.0
        %1577 = vmatprep.subr.mxu0 0.0
        %1578 = vmatpush1.msra.mxu0 0.0
        %1579 = vmatprep.mubr.f32.mxu0 0.0
        %1580 = vmatmul.mubr.f32.gmra.mrb[0].mxu0 %v1513
        %v1581 = vpop.f32.mrb[0].mxu0
        %v1582 = vadd.f32 0.0, %v1581
        %v1583 = vpop.f32.mrb[0].mxu0
        %1584 = vdwg.mxu0
        %v1585 = vld [vmem:[%s444] sm:$0xff]
        %v1586 = vld [vmem:[%s444 + $0x8] sm:$0xff]
        %v1587 = vld [vmem:[%s444 + $0x10] sm:$0xff]
        %v1588 = vld [vmem:[%s444 + $0x18] sm:$0xff]
        %v1589 = vld [vmem:[%s444 + $0x20] sm:$0xff]
        %v1590 = vld [vmem:[%s444 + $0x28] sm:$0xff]
        %v1591 = vld [vmem:[%s444 + $0x30] sm:$0xff]
        %v1592 = vld [vmem:[%s444 + $0x38] sm:$0xff]
        %v1593 = vld [vmem:[%s444 + $0x40] sm:$0xff]
        %v1594 = vld [vmem:[%s444 + $0x48] sm:$0xff]
        %v1595 = vld [vmem:[%s444 + $0x50] sm:$0xff]
        %v1596 = vld [vmem:[%s444 + $0x58] sm:$0xff]
        %v1597 = vld [vmem:[%s444 + $0x60] sm:$0xff]
        %v1598 = vld [vmem:[%s444 + $0x68] sm:$0xff]
        %v1599 = vld [vmem:[%s444 + $0x70] sm:$0xff]
        %v1600 = vld [vmem:[%s444 + $0x78] sm:$0xff]
        %v1601 = vld [vmem:[%s444 + $0x80] sm:$0xff]
        %v1602 = vld [vmem:[%s444 + $0x88] sm:$0xff]
        %v1603 = vld [vmem:[%s444 + $0x90] sm:$0xff]
        %v1604 = vld [vmem:[%s444 + $0x98] sm:$0xff]
        %v1605 = vld [vmem:[%s444 + $0xa0] sm:$0xff]
        %v1606 = vld [vmem:[%s444 + $0xa8] sm:$0xff]
        %v1607 = vld [vmem:[%s444 + $0xb0] sm:$0xff]
        %v1608 = vld [vmem:[%s444 + $0xb8] sm:$0xff]
        %v1609 = vld [vmem:[%s444 + $0xc0] sm:$0xff]
        %v1610 = vld [vmem:[%s444 + $0xc8] sm:$0xff]
        %v1611 = vld [vmem:[%s444 + $0xd0] sm:$0xff]
        %v1612 = vld [vmem:[%s444 + $0xd8] sm:$0xff]
        %v1613 = vld [vmem:[%s444 + $0xe0] sm:$0xff]
        %v1614 = vld [vmem:[%s444 + $0xe8] sm:$0xff]
        %v1615 = vld [vmem:[%s444 + $0xf0] sm:$0xff]
        %v1616 = vld [vmem:[%s444 + $0xf8] sm:$0xff]
        %v1617 = vld [vmem:[%s444 + $0x100] sm:$0xff]
        %v1618 = vld [vmem:[%s444 + $0x108] sm:$0xff]
        %v1619 = vld [vmem:[%s444 + $0x110] sm:$0xff]
        %v1620 = vld [vmem:[%s444 + $0x118] sm:$0xff]
        %v1621 = vld [vmem:[%s444 + $0x120] sm:$0xff]
        %v1622 = vld [vmem:[%s444 + $0x128] sm:$0xff]
        %v1623 = vld [vmem:[%s444 + $0x130] sm:$0xff]
        %v1624 = vld [vmem:[%s444 + $0x138] sm:$0xff]
        %v1625 = vld [vmem:[%s444 + $0x140] sm:$0xff]
        %v1626 = vld [vmem:[%s444 + $0x148] sm:$0xff]
        %v1627 = vld [vmem:[%s444 + $0x150] sm:$0xff]
        %v1628 = vld [vmem:[%s444 + $0x158] sm:$0xff]
        %v1629 = vld [vmem:[%s444 + $0x160] sm:$0xff]
        %v1630 = vld [vmem:[%s444 + $0x168] sm:$0xff]
        %v1631 = vld [vmem:[%s444 + $0x170] sm:$0xff]
        %v1632 = vld [vmem:[%s444 + $0x178] sm:$0xff]
        %v1633 = vld [vmem:[%s444 + $0x180] sm:$0xff]
        %v1634 = vld [vmem:[%s444 + $0x188] sm:$0xff]
        %v1635 = vld [vmem:[%s444 + $0x190] sm:$0xff]
        %v1636 = vld [vmem:[%s444 + $0x198] sm:$0xff]
        %v1637 = vld [vmem:[%s444 + $0x1a0] sm:$0xff]
        %v1638 = vld [vmem:[%s444 + $0x1a8] sm:$0xff]
        %v1639 = vld [vmem:[%s444 + $0x1b0] sm:$0xff]
        %v1640 = vld [vmem:[%s444 + $0x1b8] sm:$0xff]
        %v1641 = vld [vmem:[%s444 + $0x1c0] sm:$0xff]
        %v1642 = vld [vmem:[%s444 + $0x1c8] sm:$0xff]
        %v1643 = vld [vmem:[%s444 + $0x1d0] sm:$0xff]
        %v1644 = vld [vmem:[%s444 + $0x1d8] sm:$0xff]
        %v1645 = vld [vmem:[%s444 + $0x1e0] sm:$0xff]
        %v1646 = vld [vmem:[%s444 + $0x1e8] sm:$0xff]
        %v1647 = vld [vmem:[%s444 + $0x1f0] sm:$0xff]
        %v1648 = vld [vmem:[%s444 + $0x1f8] sm:$0xff]
        %1649 = vmatprep.subr.mxu0 %v1586
        %1650 = vmatpush1.msra.mxu0 %v1585
        %1651 = vmatprep.subr.mxu0 %v1590
        %1652 = vmatpush1.msra.mxu0 %v1589
        %1653 = vmatprep.subr.mxu0 %v1594
        %1654 = vmatpush1.msra.mxu0 %v1593
        %1655 = vmatprep.subr.mxu0 %v1598
        %1656 = vmatpush1.msra.mxu0 %v1597
        %1657 = vmatprep.subr.mxu0 %v1602
        %1658 = vmatpush1.msra.mxu0 %v1601
        %1659 = vmatprep.subr.mxu0 %v1606
        %1660 = vmatpush1.msra.mxu0 %v1605
        %1661 = vmatprep.subr.mxu0 %v1610
        %1662 = vmatpush1.msra.mxu0 %v1609
        %1663 = vmatprep.subr.mxu0 %v1614
        %1664 = vmatpush1.msra.mxu0 %v1613
        %1665 = vmatprep.subr.mxu0 %v1618
        %1666 = vmatpush1.msra.mxu0 %v1617
        %1667 = vmatprep.subr.mxu0 %v1622
        %1668 = vmatpush1.msra.mxu0 %v1621
        %1669 = vmatprep.subr.mxu0 %v1626
        %1670 = vmatpush1.msra.mxu0 %v1625
        %1671 = vmatprep.subr.mxu0 %v1630
        %1672 = vmatpush1.msra.mxu0 %v1629
        %1673 = vmatprep.subr.mxu0 %v1634
        %1674 = vmatpush1.msra.mxu0 %v1633
        %1675 = vmatprep.subr.mxu0 %v1638
        %1676 = vmatpush1.msra.mxu0 %v1637
        %1677 = vmatprep.subr.mxu0 %v1642
        %1678 = vmatpush1.msra.mxu0 %v1641
        %1679 = vmatprep.subr.mxu0 %v1646
        %1680 = vmatpush1.msra.mxu0 %v1645
        %1681 = vmatprep.subr.mxu0 0.0
        %1682 = vmatpush1.msra.mxu0 0.0
        %1683 = vmatprep.subr.mxu0 0.0
        %1684 = vmatpush1.msra.mxu0 0.0
        %1685 = vmatprep.subr.mxu0 0.0
        %1686 = vmatpush1.msra.mxu0 0.0
        %1687 = vmatprep.subr.mxu0 0.0
        %1688 = vmatpush1.msra.mxu0 0.0
        %1689 = vmatprep.subr.mxu0 0.0
        %1690 = vmatpush1.msra.mxu0 0.0
        %1691 = vmatprep.subr.mxu0 0.0
        %1692 = vmatpush1.msra.mxu0 0.0
        %1693 = vmatprep.subr.mxu0 0.0
        %1694 = vmatpush1.msra.mxu0 0.0
        %1695 = vmatprep.subr.mxu0 0.0
        %1696 = vmatpush1.msra.mxu0 0.0
        %1697 = vmatprep.subr.mxu0 0.0
        %1698 = vmatpush1.msra.mxu0 0.0
        %1699 = vmatprep.subr.mxu0 0.0
        %1700 = vmatpush1.msra.mxu0 0.0
        %1701 = vmatprep.subr.mxu0 0.0
        %1702 = vmatpush1.msra.mxu0 0.0
        %1703 = vmatprep.subr.mxu0 0.0
        %1704 = vmatpush1.msra.mxu0 0.0
        %1705 = vmatprep.subr.mxu0 0.0
        %1706 = vmatpush1.msra.mxu0 0.0
        %1707 = vmatprep.subr.mxu0 0.0
        %1708 = vmatpush1.msra.mxu0 0.0
        %1709 = vmatprep.subr.mxu0 0.0
        %1710 = vmatpush1.msra.mxu0 0.0
        %1711 = vmatprep.subr.mxu0 0.0
        %1712 = vmatpush1.msra.mxu0 0.0
        %1713 = vmatprep.mubr.f32.mxu0 0.0
        %1714 = vmatmul.mubr.f32.gmra.mrb[0].mxu0 %v1582
        %v1715 = vpop.f32.mrb[0].mxu0
        %v1716 = vadd.f32 0.0, %v1715
        %v1717 = vpop.f32.mrb[0].mxu0
        %v1718 = vadd.f32 0.0, %v1717
        %1719 = vdwg.mxu0
        %1720 = vmatprep.subr.mxu0 %v1588
        %1721 = vmatpush1.msra.mxu0 %v1587
        %1722 = vmatprep.subr.mxu0 %v1592
        %1723 = vmatpush1.msra.mxu0 %v1591
        %1724 = vmatprep.subr.mxu0 %v1596
        %1725 = vmatpush1.msra.mxu0 %v1595
        %1726 = vmatprep.subr.mxu0 %v1600
        %1727 = vmatpush1.msra.mxu0 %v1599
        %1728 = vmatprep.subr.mxu0 %v1604
        %1729 = vmatpush1.msra.mxu0 %v1603
        %1730 = vmatprep.subr.mxu0 %v1608
        %1731 = vmatpush1.msra.mxu0 %v1607
        %1732 = vmatprep.subr.mxu0 %v1612
        %1733 = vmatpush1.msra.mxu0 %v1611
        %1734 = vmatprep.subr.mxu0 %v1616
        %1735 = vmatpush1.msra.mxu0 %v1615
        %1736 = vmatprep.subr.mxu0 %v1620
        %1737 = vmatpush1.msra.mxu0 %v1619
        %1738 = vmatprep.subr.mxu0 %v1624
        %1739 = vmatpush1.msra.mxu0 %v1623
        %1740 = vmatprep.subr.mxu0 %v1628
        %1741 = vmatpush1.msra.mxu0 %v1627
        %1742 = vmatprep.subr.mxu0 %v1632
        %1743 = vmatpush1.msra.mxu0 %v1631
        %1744 = vmatprep.subr.mxu0 %v1636
        %1745 = vmatpush1.msra.mxu0 %v1635
        %1746 = vmatprep.subr.mxu0 %v1640
        %1747 = vmatpush1.msra.mxu0 %v1639
        %1748 = vmatprep.subr.mxu0 %v1644
        %1749 = vmatpush1.msra.mxu0 %v1643
        %1750 = vmatprep.subr.mxu0 %v1648
        %1751 = vmatpush1.msra.mxu0 %v1647
        %1752 = vmatprep.subr.mxu0 0.0
        %1753 = vmatpush1.msra.mxu0 0.0
        %1754 = vmatprep.subr.mxu0 0.0
        %1755 = vmatpush1.msra.mxu0 0.0
        %1756 = vmatprep.subr.mxu0 0.0
        %1757 = vmatpush1.msra.mxu0 0.0
        %1758 = vmatprep.subr.mxu0 0.0
        %1759 = vmatpush1.msra.mxu0 0.0
        %1760 = vmatprep.subr.mxu0 0.0
        %1761 = vmatpush1.msra.mxu0 0.0
        %1762 = vmatprep.subr.mxu0 0.0
        %1763 = vmatpush1.msra.mxu0 0.0
        %1764 = vmatprep.subr.mxu0 0.0
        %1765 = vmatpush1.msra.mxu0 0.0
        %1766 = vmatprep.subr.mxu0 0.0
        %1767 = vmatpush1.msra.mxu0 0.0
        %1768 = vmatprep.subr.mxu0 0.0
        %1769 = vmatpush1.msra.mxu0 0.0
        %1770 = vmatprep.subr.mxu0 0.0
        %1771 = vmatpush1.msra.mxu0 0.0
        %1772 = vmatprep.subr.mxu0 0.0
        %1773 = vmatpush1.msra.mxu0 0.0
        %1774 = vmatprep.subr.mxu0 0.0
        %1775 = vmatpush1.msra.mxu0 0.0
        %1776 = vmatprep.subr.mxu0 0.0
        %1777 = vmatpush1.msra.mxu0 0.0
        %1778 = vmatprep.subr.mxu0 0.0
        %1779 = vmatpush1.msra.mxu0 0.0
        %1780 = vmatprep.subr.mxu0 0.0
        %1781 = vmatpush1.msra.mxu0 0.0
        %1782 = vmatprep.subr.mxu0 0.0
        %1783 = vmatpush1.msra.mxu0 0.0
        %1784 = vmatprep.mubr.f32.mxu0 0.0
        %1785 = vmatmul.mubr.f32.gmra.mrb[0].mxu0 %v1582
        %v1786 = vpop.f32.mrb[0].mxu0
        %v1787 = vadd.f32 0.0, %v1786
        %v1788 = vpop.f32.mrb[0].mxu0
        %v1789 = vadd.f32 0.0, %v1788
        %1790 = vdwg.mxu0
        %1791 = vmatprep.subr.mxu0 %v1448
        %1792 = vmatpush1.msra.mxu0 %v1447
        %1793 = vmatprep.subr.mxu0 %v1452
        %1794 = vmatpush1.msra.mxu0 %v1451
        %1795 = vmatprep.subr.mxu0 %v1456
        %1796 = vmatpush1.msra.mxu0 %v1455
        %1797 = vmatprep.subr.mxu0 %v1460
        %1798 = vmatpush1.msra.mxu0 %v1459
        %1799 = vmatprep.subr.mxu0 %v1464
        %1800 = vmatpush1.msra.mxu0 %v1463
        %1801 = vmatprep.subr.mxu0 %v1468
        %1802 = vmatpush1.msra.mxu0 %v1467
        %1803 = vmatprep.subr.mxu0 %v1472
        %1804 = vmatpush1.msra.mxu0 %v1471
        %1805 = vmatprep.subr.mxu0 %v1476
        %1806 = vmatpush1.msra.mxu0 %v1475
        %1807 = vmatprep.subr.mxu0 %v1480
        %1808 = vmatpush1.msra.mxu0 %v1479
        %1809 = vmatprep.subr.mxu0 %v1484
        %1810 = vmatpush1.msra.mxu0 %v1483
        %1811 = vmatprep.subr.mxu0 %v1488
        %1812 = vmatpush1.msra.mxu0 %v1487
        %1813 = vmatprep.subr.mxu0 %v1492
        %1814 = vmatpush1.msra.mxu0 %v1491
        %1815 = vmatprep.subr.mxu0 %v1496
        %1816 = vmatpush1.msra.mxu0 %v1495
        %1817 = vmatprep.subr.mxu0 %v1500
        %1818 = vmatpush1.msra.mxu0 %v1499
        %1819 = vmatprep.subr.mxu0 %v1504
        %1820 = vmatpush1.msra.mxu0 %v1503
        %1821 = vmatprep.subr.mxu0 %v1508
        %1822 = vmatpush1.msra.mxu0 %v1507
        %1823 = vmatprep.subr.mxu0 0.0
        %1824 = vmatpush1.msra.mxu0 0.0
        %1825 = vmatprep.subr.mxu0 0.0
        %1826 = vmatpush1.msra.mxu0 0.0
        %1827 = vmatprep.subr.mxu0 0.0
        %1828 = vmatpush1.msra.mxu0 0.0
        %1829 = vmatprep.subr.mxu0 0.0
        %1830 = vmatpush1.msra.mxu0 0.0
        %1831 = vmatprep.subr.mxu0 0.0
        %1832 = vmatpush1.msra.mxu0 0.0
        %1833 = vmatprep.subr.mxu0 0.0
        %1834 = vmatpush1.msra.mxu0 0.0
        %1835 = vmatprep.subr.mxu0 0.0
        %1836 = vmatpush1.msra.mxu0 0.0
        %1837 = vmatprep.subr.mxu0 0.0
        %1838 = vmatpush1.msra.mxu0 0.0
        %1839 = vmatprep.subr.mxu0 0.0
        %1840 = vmatpush1.msra.mxu0 0.0
        %1841 = vmatprep.subr.mxu0 0.0
        %1842 = vmatpush1.msra.mxu0 0.0
        %1843 = vmatprep.subr.mxu0 0.0
        %1844 = vmatpush1.msra.mxu0 0.0
        %1845 = vmatprep.subr.mxu0 0.0
        %1846 = vmatpush1.msra.mxu0 0.0
        %1847 = vmatprep.subr.mxu0 0.0
        %1848 = vmatpush1.msra.mxu0 0.0
        %1849 = vmatprep.subr.mxu0 0.0
        %1850 = vmatpush1.msra.mxu0 0.0
        %1851 = vmatprep.subr.mxu0 0.0
        %1852 = vmatpush1.msra.mxu0 0.0
        %1853 = vmatprep.subr.mxu0 0.0
        %1854 = vmatpush1.msra.mxu0 0.0
        %1855 = vmatprep.mubr.f32.mxu0 0.0
        %1856 = vmatmul.mubr.f32.gmra.mrb[0].mxu0 %v1444
        %v1857 = vpop.f32.mrb[0].mxu0
        %v1858 = vadd.f32 %v1716, %v1857
        %v1859 = vpop.f32.mrb[0].mxu0
        %v1860 = vadd.f32 %v1718, %v1859
        %1861 = vdwg.mxu0
        %1862 = vmatprep.subr.mxu0 %v1450
        %1863 = vmatpush1.msra.mxu0 %v1449
        %1864 = vmatprep.subr.mxu0 %v1454
        %1865 = vmatpush1.msra.mxu0 %v1453
        %1866 = vmatprep.subr.mxu0 %v1458
        %1867 = vmatpush1.msra.mxu0 %v1457
        %1868 = vmatprep.subr.mxu0 %v1462
        %1869 = vmatpush1.msra.mxu0 %v1461
        %1870 = vmatprep.subr.mxu0 %v1466
        %1871 = vmatpush1.msra.mxu0 %v1465
        %1872 = vmatprep.subr.mxu0 %v1470
        %1873 = vmatpush1.msra.mxu0 %v1469
        %1874 = vmatprep.subr.mxu0 %v1474
        %1875 = vmatpush1.msra.mxu0 %v1473
        %1876 = vmatprep.subr.mxu0 %v1478
        %1877 = vmatpush1.msra.mxu0 %v1477
        %1878 = vmatprep.subr.mxu0 %v1482
        %1879 = vmatpush1.msra.mxu0 %v1481
        %1880 = vmatprep.subr.mxu0 %v1486
        %1881 = vmatpush1.msra.mxu0 %v1485
        %1882 = vmatprep.subr.mxu0 %v1490
        %1883 = vmatpush1.msra.mxu0 %v1489
        %1884 = vmatprep.subr.mxu0 %v1494
        %1885 = vmatpush1.msra.mxu0 %v1493
        %1886 = vmatprep.subr.mxu0 %v1498
        %1887 = vmatpush1.msra.mxu0 %v1497
        %1888 = vmatprep.subr.mxu0 %v1502
        %1889 = vmatpush1.msra.mxu0 %v1501
        %1890 = vmatprep.subr.mxu0 %v1506
        %1891 = vmatpush1.msra.mxu0 %v1505
        %1892 = vmatprep.subr.mxu0 %v1510
        %1893 = vmatpush1.msra.mxu0 %v1509
        %1894 = vmatprep.subr.mxu0 0.0
        %1895 = vmatpush1.msra.mxu0 0.0
        %1896 = vmatprep.subr.mxu0 0.0
        %1897 = vmatpush1.msra.mxu0 0.0
        %1898 = vmatprep.subr.mxu0 0.0
        %1899 = vmatpush1.msra.mxu0 0.0
        %1900 = vmatprep.subr.mxu0 0.0
        %1901 = vmatpush1.msra.mxu0 0.0
        %1902 = vmatprep.subr.mxu0 0.0
        %1903 = vmatpush1.msra.mxu0 0.0
        %1904 = vmatprep.subr.mxu0 0.0
        %1905 = vmatpush1.msra.mxu0 0.0
        %1906 = vmatprep.subr.mxu0 0.0
        %1907 = vmatpush1.msra.mxu0 0.0
        %1908 = vmatprep.subr.mxu0 0.0
        %1909 = vmatpush1.msra.mxu0 0.0
        %1910 = vmatprep.subr.mxu0 0.0
        %1911 = vmatpush1.msra.mxu0 0.0
        %1912 = vmatprep.subr.mxu0 0.0
        %1913 = vmatpush1.msra.mxu0 0.0
        %1914 = vmatprep.subr.mxu0 0.0
        %1915 = vmatpush1.msra.mxu0 0.0
        %1916 = vmatprep.subr.mxu0 0.0
        %1917 = vmatpush1.msra.mxu0 0.0
        %1918 = vmatprep.subr.mxu0 0.0
        %1919 = vmatpush1.msra.mxu0 0.0
        %1920 = vmatprep.subr.mxu0 0.0
        %1921 = vmatpush1.msra.mxu0 0.0
        %1922 = vmatprep.subr.mxu0 0.0
        %1923 = vmatpush1.msra.mxu0 0.0
        %1924 = vmatprep.subr.mxu0 0.0
        %1925 = vmatpush1.msra.mxu0 0.0
        %1926 = vmatprep.mubr.f32.mxu0 0.0
        %1927 = vmatmul.mubr.f32.gmra.mrb[0].mxu0 %v1444
        %v1928 = vpop.f32.mrb[0].mxu0
        %v1929 = vadd.f32 %v1787, %v1928
        %v1930 = vpop.f32.mrb[0].mxu0
        %v1931 = vadd.f32 %v1789, %v1930
        %1932 = vdwg.mxu0
        %v1933 = vld [vmem:[%s793] sm:$0xff]
        %v1935 = vsel %vm227, %v1933, 0
        %1937 = vmatprep.subr.mxu0 0.0
        %1938 = vmatpush1.msra.mxu0 %v1375
        %1939 = vmatprep.subr.mxu0 0.0
        %1940 = vmatpush1.msra.mxu0 0.0
        %1941 = vmatprep.subr.mxu0 0.0
        %1942 = vmatpush1.msra.mxu0 0.0
        %1943 = vmatprep.subr.mxu0 0.0
        %1944 = vmatpush1.msra.mxu0 0.0
        %1945 = vmatprep.subr.mxu0 0.0
        %1946 = vmatpush1.msra.mxu0 0.0
        %1947 = vmatprep.subr.mxu0 0.0
        %1948 = vmatpush1.msra.mxu0 0.0
        %1949 = vmatprep.subr.mxu0 0.0
        %1950 = vmatpush1.msra.mxu0 0.0
        %1951 = vmatprep.subr.mxu0 0.0
        %1952 = vmatpush1.msra.mxu0 0.0
        %1953 = vmatprep.subr.mxu0 0.0
        %1954 = vmatpush1.msra.mxu0 0.0
        %1955 = vmatprep.subr.mxu0 0.0
        %1956 = vmatpush1.msra.mxu0 0.0
        %1957 = vmatprep.subr.mxu0 0.0
        %1958 = vmatpush1.msra.mxu0 0.0
        %1959 = vmatprep.subr.mxu0 0.0
        %1960 = vmatpush1.msra.mxu0 0.0
        %1961 = vmatprep.subr.mxu0 0.0
        %1962 = vmatpush1.msra.mxu0 0.0
        %1963 = vmatprep.subr.mxu0 0.0
        %1964 = vmatpush1.msra.mxu0 0.0
        %1965 = vmatprep.subr.mxu0 0.0
        %1966 = vmatpush1.msra.mxu0 0.0
        %1967 = vmatprep.subr.mxu0 0.0
        %1968 = vmatpush1.msra.mxu0 0.0
        %1969 = vmatprep.subr.mxu0 0.0
        %1970 = vmatpush1.msra.mxu0 0.0
        %1971 = vmatprep.subr.mxu0 0.0
        %1972 = vmatpush1.msra.mxu0 0.0
        %1973 = vmatprep.subr.mxu0 0.0
        %1974 = vmatpush1.msra.mxu0 0.0
        %1975 = vmatprep.subr.mxu0 0.0
        %1976 = vmatpush1.msra.mxu0 0.0
        %1977 = vmatprep.subr.mxu0 0.0
        %1978 = vmatpush1.msra.mxu0 0.0
        %1979 = vmatprep.subr.mxu0 0.0
        %1980 = vmatpush1.msra.mxu0 0.0
        %1981 = vmatprep.subr.mxu0 0.0
        %1982 = vmatpush1.msra.mxu0 0.0
        %1983 = vmatprep.subr.mxu0 0.0
        %1984 = vmatpush1.msra.mxu0 0.0
        %1985 = vmatprep.subr.mxu0 0.0
        %1986 = vmatpush1.msra.mxu0 0.0
        %1987 = vmatprep.subr.mxu0 0.0
        %1988 = vmatpush1.msra.mxu0 0.0
        %1989 = vmatprep.subr.mxu0 0.0
        %1990 = vmatpush1.msra.mxu0 0.0
        %1991 = vmatprep.subr.mxu0 0.0
        %1992 = vmatpush1.msra.mxu0 0.0
        %1993 = vmatprep.subr.mxu0 0.0
        %1994 = vmatpush1.msra.mxu0 0.0
        %1995 = vmatprep.subr.mxu0 0.0
        %1996 = vmatpush1.msra.mxu0 0.0
        %1997 = vmatprep.subr.mxu0 0.0
        %1998 = vmatpush1.msra.mxu0 0.0
        %1999 = vmatprep.subr.mxu0 0.0
        %2000 = vmatpush1.msra.mxu0 0.0
        %2001 = vmatprep.mubr.f32.mxu0 0.0
        %2002 = vmatmul.mubr.f32.gmra.mrb[0].mxu0 %v1935
        %v2003 = vpop.f32.mrb[0].mxu0
        %v2004 = vadd.f32 0.0, %v2003
        %v2005 = vpop.f32.mrb[0].mxu0
        %2006 = vdwg.mxu0
        %v2007 = vld [vmem:[%s868] sm:$0xff]
        %v2008 = vld [vmem:[%s868 + $0x8] sm:$0xff]
        %v2009 = vld [vmem:[%s868 + $0x10] sm:$0xff]
        %v2010 = vld [vmem:[%s868 + $0x18] sm:$0xff]
        %v2011 = vld [vmem:[%s868 + $0x20] sm:$0xff]
        %v2012 = vld [vmem:[%s868 + $0x28] sm:$0xff]
        %v2013 = vld [vmem:[%s868 + $0x30] sm:$0xff]
        %v2014 = vld [vmem:[%s868 + $0x38] sm:$0xff]
        %v2015 = vld [vmem:[%s868 + $0x40] sm:$0xff]
        %v2016 = vld [vmem:[%s868 + $0x48] sm:$0xff]
        %v2017 = vld [vmem:[%s868 + $0x50] sm:$0xff]
        %v2018 = vld [vmem:[%s868 + $0x58] sm:$0xff]
        %v2019 = vld [vmem:[%s868 + $0x60] sm:$0xff]
        %v2020 = vld [vmem:[%s868 + $0x68] sm:$0xff]
        %v2021 = vld [vmem:[%s868 + $0x70] sm:$0xff]
        %v2022 = vld [vmem:[%s868 + $0x78] sm:$0xff]
        %v2023 = vld [vmem:[%s868 + $0x80] sm:$0xff]
        %v2024 = vld [vmem:[%s868 + $0x88] sm:$0xff]
        %v2025 = vld [vmem:[%s868 + $0x90] sm:$0xff]
        %v2026 = vld [vmem:[%s868 + $0x98] sm:$0xff]
        %v2027 = vld [vmem:[%s868 + $0xa0] sm:$0xff]
        %v2028 = vld [vmem:[%s868 + $0xa8] sm:$0xff]
        %v2029 = vld [vmem:[%s868 + $0xb0] sm:$0xff]
        %v2030 = vld [vmem:[%s868 + $0xb8] sm:$0xff]
        %v2031 = vld [vmem:[%s868 + $0xc0] sm:$0xff]
        %v2032 = vld [vmem:[%s868 + $0xc8] sm:$0xff]
        %v2033 = vld [vmem:[%s868 + $0xd0] sm:$0xff]
        %v2034 = vld [vmem:[%s868 + $0xd8] sm:$0xff]
        %v2035 = vld [vmem:[%s868 + $0xe0] sm:$0xff]
        %v2036 = vld [vmem:[%s868 + $0xe8] sm:$0xff]
        %v2037 = vld [vmem:[%s868 + $0xf0] sm:$0xff]
        %v2038 = vld [vmem:[%s868 + $0xf8] sm:$0xff]
        %v2039 = vld [vmem:[%s868 + $0x100] sm:$0xff]
        %v2040 = vld [vmem:[%s868 + $0x108] sm:$0xff]
        %v2041 = vld [vmem:[%s868 + $0x110] sm:$0xff]
        %v2042 = vld [vmem:[%s868 + $0x118] sm:$0xff]
        %v2043 = vld [vmem:[%s868 + $0x120] sm:$0xff]
        %v2044 = vld [vmem:[%s868 + $0x128] sm:$0xff]
        %v2045 = vld [vmem:[%s868 + $0x130] sm:$0xff]
        %v2046 = vld [vmem:[%s868 + $0x138] sm:$0xff]
        %v2047 = vld [vmem:[%s868 + $0x140] sm:$0xff]
        %v2048 = vld [vmem:[%s868 + $0x148] sm:$0xff]
        %v2049 = vld [vmem:[%s868 + $0x150] sm:$0xff]
        %v2050 = vld [vmem:[%s868 + $0x158] sm:$0xff]
        %v2051 = vld [vmem:[%s868 + $0x160] sm:$0xff]
        %v2052 = vld [vmem:[%s868 + $0x168] sm:$0xff]
        %v2053 = vld [vmem:[%s868 + $0x170] sm:$0xff]
        %v2054 = vld [vmem:[%s868 + $0x178] sm:$0xff]
        %v2055 = vld [vmem:[%s868 + $0x180] sm:$0xff]
        %v2056 = vld [vmem:[%s868 + $0x188] sm:$0xff]
        %v2057 = vld [vmem:[%s868 + $0x190] sm:$0xff]
        %v2058 = vld [vmem:[%s868 + $0x198] sm:$0xff]
        %v2059 = vld [vmem:[%s868 + $0x1a0] sm:$0xff]
        %v2060 = vld [vmem:[%s868 + $0x1a8] sm:$0xff]
        %v2061 = vld [vmem:[%s868 + $0x1b0] sm:$0xff]
        %v2062 = vld [vmem:[%s868 + $0x1b8] sm:$0xff]
        %v2063 = vld [vmem:[%s868 + $0x1c0] sm:$0xff]
        %v2064 = vld [vmem:[%s868 + $0x1c8] sm:$0xff]
        %v2065 = vld [vmem:[%s868 + $0x1d0] sm:$0xff]
        %v2066 = vld [vmem:[%s868 + $0x1d8] sm:$0xff]
        %v2067 = vld [vmem:[%s868 + $0x1e0] sm:$0xff]
        %v2068 = vld [vmem:[%s868 + $0x1e8] sm:$0xff]
        %v2069 = vld [vmem:[%s868 + $0x1f0] sm:$0xff]
        %v2070 = vld [vmem:[%s868 + $0x1f8] sm:$0xff]
        %2071 = vmatprep.subr.mxu0 %v2008
        %2072 = vmatpush1.msra.mxu0 %v2007
        %2073 = vmatprep.subr.mxu0 %v2012
        %2074 = vmatpush1.msra.mxu0 %v2011
        %2075 = vmatprep.subr.mxu0 %v2016
        %2076 = vmatpush1.msra.mxu0 %v2015
        %2077 = vmatprep.subr.mxu0 %v2020
        %2078 = vmatpush1.msra.mxu0 %v2019
        %2079 = vmatprep.subr.mxu0 %v2024
        %2080 = vmatpush1.msra.mxu0 %v2023
        %2081 = vmatprep.subr.mxu0 %v2028
        %2082 = vmatpush1.msra.mxu0 %v2027
        %2083 = vmatprep.subr.mxu0 %v2032
        %2084 = vmatpush1.msra.mxu0 %v2031
        %2085 = vmatprep.subr.mxu0 %v2036
        %2086 = vmatpush1.msra.mxu0 %v2035
        %2087 = vmatprep.subr.mxu0 %v2040
        %2088 = vmatpush1.msra.mxu0 %v2039
        %2089 = vmatprep.subr.mxu0 %v2044
        %2090 = vmatpush1.msra.mxu0 %v2043
        %2091 = vmatprep.subr.mxu0 %v2048
        %2092 = vmatpush1.msra.mxu0 %v2047
        %2093 = vmatprep.subr.mxu0 %v2052
        %2094 = vmatpush1.msra.mxu0 %v2051
        %2095 = vmatprep.subr.mxu0 %v2056
        %2096 = vmatpush1.msra.mxu0 %v2055
        %2097 = vmatprep.subr.mxu0 %v2060
        %2098 = vmatpush1.msra.mxu0 %v2059
        %2099 = vmatprep.subr.mxu0 %v2064
        %2100 = vmatpush1.msra.mxu0 %v2063
        %2101 = vmatprep.subr.mxu0 %v2068
        %2102 = vmatpush1.msra.mxu0 %v2067
        %2103 = vmatprep.subr.mxu0 0.0
        %2104 = vmatpush1.msra.mxu0 0.0
        %2105 = vmatprep.subr.mxu0 0.0
        %2106 = vmatpush1.msra.mxu0 0.0
        %2107 = vmatprep.subr.mxu0 0.0
        %2108 = vmatpush1.msra.mxu0 0.0
        %2109 = vmatprep.subr.mxu0 0.0
        %2110 = vmatpush1.msra.mxu0 0.0
        %2111 = vmatprep.subr.mxu0 0.0
        %2112 = vmatpush1.msra.mxu0 0.0
        %2113 = vmatprep.subr.mxu0 0.0
        %2114 = vmatpush1.msra.mxu0 0.0
        %2115 = vmatprep.subr.mxu0 0.0
        %2116 = vmatpush1.msra.mxu0 0.0
        %2117 = vmatprep.subr.mxu0 0.0
        %2118 = vmatpush1.msra.mxu0 0.0
        %2119 = vmatprep.subr.mxu0 0.0
        %2120 = vmatpush1.msra.mxu0 0.0
        %2121 = vmatprep.subr.mxu0 0.0
        %2122 = vmatpush1.msra.mxu0 0.0
        %2123 = vmatprep.subr.mxu0 0.0
        %2124 = vmatpush1.msra.mxu0 0.0
        %2125 = vmatprep.subr.mxu0 0.0
        %2126 = vmatpush1.msra.mxu0 0.0
        %2127 = vmatprep.subr.mxu0 0.0
        %2128 = vmatpush1.msra.mxu0 0.0
        %2129 = vmatprep.subr.mxu0 0.0
        %2130 = vmatpush1.msra.mxu0 0.0
        %2131 = vmatprep.subr.mxu0 0.0
        %2132 = vmatpush1.msra.mxu0 0.0
        %2133 = vmatprep.subr.mxu0 0.0
        %2134 = vmatpush1.msra.mxu0 0.0
        %2135 = vmatprep.mubr.f32.mxu0 0.0
        %2136 = vmatmul.mubr.f32.gmra.mrb[0].mxu0 %v2004
        %v2137 = vpop.f32.mrb[0].mxu0
        %v2138 = vadd.f32 0.0, %v2137
        %v2139 = vpop.f32.mrb[0].mxu0
        %v2140 = vadd.f32 0.0, %v2139
        %2141 = vdwg.mxu0
        %2142 = vmatprep.subr.mxu0 %v2010
        %2143 = vmatpush1.msra.mxu0 %v2009
        %2144 = vmatprep.subr.mxu0 %v2014
        %2145 = vmatpush1.msra.mxu0 %v2013
        %2146 = vmatprep.subr.mxu0 %v2018
        %2147 = vmatpush1.msra.mxu0 %v2017
        %2148 = vmatprep.subr.mxu0 %v2022
        %2149 = vmatpush1.msra.mxu0 %v2021
        %2150 = vmatprep.subr.mxu0 %v2026
        %2151 = vmatpush1.msra.mxu0 %v2025
        %2152 = vmatprep.subr.mxu0 %v2030
        %2153 = vmatpush1.msra.mxu0 %v2029
        %2154 = vmatprep.subr.mxu0 %v2034
        %2155 = vmatpush1.msra.mxu0 %v2033
        %2156 = vmatprep.subr.mxu0 %v2038
        %2157 = vmatpush1.msra.mxu0 %v2037
        %2158 = vmatprep.subr.mxu0 %v2042
        %2159 = vmatpush1.msra.mxu0 %v2041
        %2160 = vmatprep.subr.mxu0 %v2046
        %2161 = vmatpush1.msra.mxu0 %v2045
        %2162 = vmatprep.subr.mxu0 %v2050
        %2163 = vmatpush1.msra.mxu0 %v2049
        %2164 = vmatprep.subr.mxu0 %v2054
        %2165 = vmatpush1.msra.mxu0 %v2053
        %2166 = vmatprep.subr.mxu0 %v2058
        %2167 = vmatpush1.msra.mxu0 %v2057
        %2168 = vmatprep.subr.mxu0 %v2062
        %2169 = vmatpush1.msra.mxu0 %v2061
        %2170 = vmatprep.subr.mxu0 %v2066
        %2171 = vmatpush1.msra.mxu0 %v2065
        %2172 = vmatprep.subr.mxu0 %v2070
        %2173 = vmatpush1.msra.mxu0 %v2069
        %2174 = vmatprep.subr.mxu0 0.0
        %2175 = vmatpush1.msra.mxu0 0.0
        %2176 = vmatprep.subr.mxu0 0.0
        %2177 = vmatpush1.msra.mxu0 0.0
        %2178 = vmatprep.subr.mxu0 0.0
        %2179 = vmatpush1.msra.mxu0 0.0
        %2180 = vmatprep.subr.mxu0 0.0
        %2181 = vmatpush1.msra.mxu0 0.0
        %2182 = vmatprep.subr.mxu0 0.0
        %2183 = vmatpush1.msra.mxu0 0.0
        %2184 = vmatprep.subr.mxu0 0.0
        %2185 = vmatpush1.msra.mxu0 0.0
        %2186 = vmatprep.subr.mxu0 0.0
        %2187 = vmatpush1.msra.mxu0 0.0
        %2188 = vmatprep.subr.mxu0 0.0
        %2189 = vmatpush1.msra.mxu0 0.0
        %2190 = vmatprep.subr.mxu0 0.0
        %2191 = vmatpush1.msra.mxu0 0.0
        %2192 = vmatprep.subr.mxu0 0.0
        %2193 = vmatpush1.msra.mxu0 0.0
        %2194 = vmatprep.subr.mxu0 0.0
        %2195 = vmatpush1.msra.mxu0 0.0
        %2196 = vmatprep.subr.mxu0 0.0
        %2197 = vmatpush1.msra.mxu0 0.0
        %2198 = vmatprep.subr.mxu0 0.0
        %2199 = vmatpush1.msra.mxu0 0.0
        %2200 = vmatprep.subr.mxu0 0.0
        %2201 = vmatpush1.msra.mxu0 0.0
        %2202 = vmatprep.subr.mxu0 0.0
        %2203 = vmatpush1.msra.mxu0 0.0
        %2204 = vmatprep.subr.mxu0 0.0
        %2205 = vmatpush1.msra.mxu0 0.0
        %2206 = vmatprep.mubr.f32.mxu0 0.0
        %2207 = vmatmul.mubr.f32.gmra.mrb[0].mxu0 %v2004
        %v2208 = vpop.f32.mrb[0].mxu0
        %v2209 = vadd.f32 0.0, %v2208
        %v2210 = vpop.f32.mrb[0].mxu0
        %v2211 = vadd.f32 0.0, %v2210
        %2212 = vdwg.mxu0
        %v2213 = vadd.f32 %v1858, %v2138
        %v2214 = vadd.f32 %v1860, %v2140
        %v2215 = vadd.f32 %v1929, %v2209
        %v2216 = vadd.f32 %v1931, %v2211
        %v2217 = vld [vmem:[%s1079] sm:$0xff]
        %v2219 = vsel %vm227, %v2217, 0
        %2221 = vmatprep.subr.mxu0 0.0
        %2222 = vmatpush1.msra.mxu0 %v1375
        %2223 = vmatprep.subr.mxu0 0.0
        %2224 = vmatpush1.msra.mxu0 0.0
        %2225 = vmatprep.subr.mxu0 0.0
        %2226 = vmatpush1.msra.mxu0 0.0
        %2227 = vmatprep.subr.mxu0 0.0
        %2228 = vmatpush1.msra.mxu0 0.0
        %2229 = vmatprep.subr.mxu0 0.0
        %2230 = vmatpush1.msra.mxu0 0.0
        %2231 = vmatprep.subr.mxu0 0.0
        %2232 = vmatpush1.msra.mxu0 0.0
        %2233 = vmatprep.subr.mxu0 0.0
        %2234 = vmatpush1.msra.mxu0 0.0
        %2235 = vmatprep.subr.mxu0 0.0
        %2236 = vmatpush1.msra.mxu0 0.0
        %2237 = vmatprep.subr.mxu0 0.0
        %2238 = vmatpush1.msra.mxu0 0.0
        %2239 = vmatprep.subr.mxu0 0.0
        %2240 = vmatpush1.msra.mxu0 0.0
        %2241 = vmatprep.subr.mxu0 0.0
        %2242 = vmatpush1.msra.mxu0 0.0
        %2243 = vmatprep.subr.mxu0 0.0
        %2244 = vmatpush1.msra.mxu0 0.0
        %2245 = vmatprep.subr.mxu0 0.0
        %2246 = vmatpush1.msra.mxu0 0.0
        %2247 = vmatprep.subr.mxu0 0.0
        %2248 = vmatpush1.msra.mxu0 0.0
        %2249 = vmatprep.subr.mxu0 0.0
        %2250 = vmatpush1.msra.mxu0 0.0
        %2251 = vmatprep.subr.mxu0 0.0
        %2252 = vmatpush1.msra.mxu0 0.0
        %2253 = vmatprep.subr.mxu0 0.0
        %2254 = vmatpush1.msra.mxu0 0.0
        %2255 = vmatprep.subr.mxu0 0.0
        %2256 = vmatpush1.msra.mxu0 0.0
        %2257 = vmatprep.subr.mxu0 0.0
        %2258 = vmatpush1.msra.mxu0 0.0
        %2259 = vmatprep.subr.mxu0 0.0
        %2260 = vmatpush1.msra.mxu0 0.0
        %2261 = vmatprep.subr.mxu0 0.0
        %2262 = vmatpush1.msra.mxu0 0.0
        %2263 = vmatprep.subr.mxu0 0.0
        %2264 = vmatpush1.msra.mxu0 0.0
        %2265 = vmatprep.subr.mxu0 0.0
        %2266 = vmatpush1.msra.mxu0 0.0
        %2267 = vmatprep.subr.mxu0 0.0
        %2268 = vmatpush1.msra.mxu0 0.0
        %2269 = vmatprep.subr.mxu0 0.0
        %2270 = vmatpush1.msra.mxu0 0.0
        %2271 = vmatprep.subr.mxu0 0.0
        %2272 = vmatpush1.msra.mxu0 0.0
        %2273 = vmatprep.subr.mxu0 0.0
        %2274 = vmatpush1.msra.mxu0 0.0
        %2275 = vmatprep.subr.mxu0 0.0
        %2276 = vmatpush1.msra.mxu0 0.0
        %2277 = vmatprep.subr.mxu0 0.0
        %2278 = vmatpush1.msra.mxu0 0.0
        %2279 = vmatprep.subr.mxu0 0.0
        %2280 = vmatpush1.msra.mxu0 0.0
        %2281 = vmatprep.subr.mxu0 0.0
        %2282 = vmatpush1.msra.mxu0 0.0
        %2283 = vmatprep.subr.mxu0 0.0
        %2284 = vmatpush1.msra.mxu0 0.0
        %2285 = vmatprep.mubr.f32.mxu0 0.0
        %2286 = vmatmul.mubr.f32.gmra.mrb[0].mxu0 %v2219
        %v2287 = vpop.f32.mrb[0].mxu0
        %v2288 = vadd.f32 0.0, %v2287
        %v2289 = vpop.f32.mrb[0].mxu0
        %2290 = vdwg.mxu0
        %v2291 = vld [vmem:[%s1154] sm:$0xff]
        %v2292 = vld [vmem:[%s1154 + $0x8] sm:$0xff]
        %v2293 = vld [vmem:[%s1154 + $0x10] sm:$0xff]
        %v2294 = vld [vmem:[%s1154 + $0x18] sm:$0xff]
        %v2295 = vld [vmem:[%s1154 + $0x20] sm:$0xff]
        %v2296 = vld [vmem:[%s1154 + $0x28] sm:$0xff]
        %v2297 = vld [vmem:[%s1154 + $0x30] sm:$0xff]
        %v2298 = vld [vmem:[%s1154 + $0x38] sm:$0xff]
        %v2299 = vld [vmem:[%s1154 + $0x40] sm:$0xff]
        %v2300 = vld [vmem:[%s1154 + $0x48] sm:$0xff]
        %v2301 = vld [vmem:[%s1154 + $0x50] sm:$0xff]
        %v2302 = vld [vmem:[%s1154 + $0x58] sm:$0xff]
        %v2303 = vld [vmem:[%s1154 + $0x60] sm:$0xff]
        %v2304 = vld [vmem:[%s1154 + $0x68] sm:$0xff]
        %v2305 = vld [vmem:[%s1154 + $0x70] sm:$0xff]
        %v2306 = vld [vmem:[%s1154 + $0x78] sm:$0xff]
        %v2307 = vld [vmem:[%s1154 + $0x80] sm:$0xff]
        %v2308 = vld [vmem:[%s1154 + $0x88] sm:$0xff]
        %v2309 = vld [vmem:[%s1154 + $0x90] sm:$0xff]
        %v2310 = vld [vmem:[%s1154 + $0x98] sm:$0xff]
        %v2311 = vld [vmem:[%s1154 + $0xa0] sm:$0xff]
        %v2312 = vld [vmem:[%s1154 + $0xa8] sm:$0xff]
        %v2313 = vld [vmem:[%s1154 + $0xb0] sm:$0xff]
        %v2314 = vld [vmem:[%s1154 + $0xb8] sm:$0xff]
        %v2315 = vld [vmem:[%s1154 + $0xc0] sm:$0xff]
        %v2316 = vld [vmem:[%s1154 + $0xc8] sm:$0xff]
        %v2317 = vld [vmem:[%s1154 + $0xd0] sm:$0xff]
        %v2318 = vld [vmem:[%s1154 + $0xd8] sm:$0xff]
        %v2319 = vld [vmem:[%s1154 + $0xe0] sm:$0xff]
        %v2320 = vld [vmem:[%s1154 + $0xe8] sm:$0xff]
        %v2321 = vld [vmem:[%s1154 + $0xf0] sm:$0xff]
        %v2322 = vld [vmem:[%s1154 + $0xf8] sm:$0xff]
        %v2323 = vld [vmem:[%s1154 + $0x100] sm:$0xff]
        %v2324 = vld [vmem:[%s1154 + $0x108] sm:$0xff]
        %v2325 = vld [vmem:[%s1154 + $0x110] sm:$0xff]
        %v2326 = vld [vmem:[%s1154 + $0x118] sm:$0xff]
        %v2327 = vld [vmem:[%s1154 + $0x120] sm:$0xff]
        %v2328 = vld [vmem:[%s1154 + $0x128] sm:$0xff]
        %v2329 = vld [vmem:[%s1154 + $0x130] sm:$0xff]
        %v2330 = vld [vmem:[%s1154 + $0x138] sm:$0xff]
        %v2331 = vld [vmem:[%s1154 + $0x140] sm:$0xff]
        %v2332 = vld [vmem:[%s1154 + $0x148] sm:$0xff]
        %v2333 = vld [vmem:[%s1154 + $0x150] sm:$0xff]
        %v2334 = vld [vmem:[%s1154 + $0x158] sm:$0xff]
        %v2335 = vld [vmem:[%s1154 + $0x160] sm:$0xff]
        %v2336 = vld [vmem:[%s1154 + $0x168] sm:$0xff]
        %v2337 = vld [vmem:[%s1154 + $0x170] sm:$0xff]
        %v2338 = vld [vmem:[%s1154 + $0x178] sm:$0xff]
        %v2339 = vld [vmem:[%s1154 + $0x180] sm:$0xff]
        %v2340 = vld [vmem:[%s1154 + $0x188] sm:$0xff]
        %v2341 = vld [vmem:[%s1154 + $0x190] sm:$0xff]
        %v2342 = vld [vmem:[%s1154 + $0x198] sm:$0xff]
        %v2343 = vld [vmem:[%s1154 + $0x1a0] sm:$0xff]
        %v2344 = vld [vmem:[%s1154 + $0x1a8] sm:$0xff]
        %v2345 = vld [vmem:[%s1154 + $0x1b0] sm:$0xff]
        %v2346 = vld [vmem:[%s1154 + $0x1b8] sm:$0xff]
        %v2347 = vld [vmem:[%s1154 + $0x1c0] sm:$0xff]
        %v2348 = vld [vmem:[%s1154 + $0x1c8] sm:$0xff]
        %v2349 = vld [vmem:[%s1154 + $0x1d0] sm:$0xff]
        %v2350 = vld [vmem:[%s1154 + $0x1d8] sm:$0xff]
        %v2351 = vld [vmem:[%s1154 + $0x1e0] sm:$0xff]
        %v2352 = vld [vmem:[%s1154 + $0x1e8] sm:$0xff]
        %v2353 = vld [vmem:[%s1154 + $0x1f0] sm:$0xff]
        %v2354 = vld [vmem:[%s1154 + $0x1f8] sm:$0xff]
        %2355 = vmatprep.subr.mxu0 %v2292
        %2356 = vmatpush1.msra.mxu0 %v2291
        %2357 = vmatprep.subr.mxu0 %v2296
        %2358 = vmatpush1.msra.mxu0 %v2295
        %2359 = vmatprep.subr.mxu0 %v2300
        %2360 = vmatpush1.msra.mxu0 %v2299
        %2361 = vmatprep.subr.mxu0 %v2304
        %2362 = vmatpush1.msra.mxu0 %v2303
        %2363 = vmatprep.subr.mxu0 %v2308
        %2364 = vmatpush1.msra.mxu0 %v2307
        %2365 = vmatprep.subr.mxu0 %v2312
        %2366 = vmatpush1.msra.mxu0 %v2311
        %2367 = vmatprep.subr.mxu0 %v2316
        %2368 = vmatpush1.msra.mxu0 %v2315
        %2369 = vmatprep.subr.mxu0 %v2320
        %2370 = vmatpush1.msra.mxu0 %v2319
        %2371 = vmatprep.subr.mxu0 %v2324
        %2372 = vmatpush1.msra.mxu0 %v2323
        %2373 = vmatprep.subr.mxu0 %v2328
        %2374 = vmatpush1.msra.mxu0 %v2327
        %2375 = vmatprep.subr.mxu0 %v2332
        %2376 = vmatpush1.msra.mxu0 %v2331
        %2377 = vmatprep.subr.mxu0 %v2336
        %2378 = vmatpush1.msra.mxu0 %v2335
        %2379 = vmatprep.subr.mxu0 %v2340
        %2380 = vmatpush1.msra.mxu0 %v2339
        %2381 = vmatprep.subr.mxu0 %v2344
        %2382 = vmatpush1.msra.mxu0 %v2343
        %2383 = vmatprep.subr.mxu0 %v2348
        %2384 = vmatpush1.msra.mxu0 %v2347
        %2385 = vmatprep.subr.mxu0 %v2352
        %2386 = vmatpush1.msra.mxu0 %v2351
        %2387 = vmatprep.subr.mxu0 0.0
        %2388 = vmatpush1.msra.mxu0 0.0
        %2389 = vmatprep.subr.mxu0 0.0
        %2390 = vmatpush1.msra.mxu0 0.0
        %2391 = vmatprep.subr.mxu0 0.0
        %2392 = vmatpush1.msra.mxu0 0.0
        %2393 = vmatprep.subr.mxu0 0.0
        %2394 = vmatpush1.msra.mxu0 0.0
        %2395 = vmatprep.subr.mxu0 0.0
        %2396 = vmatpush1.msra.mxu0 0.0
        %2397 = vmatprep.subr.mxu0 0.0
        %2398 = vmatpush1.msra.mxu0 0.0
        %2399 = vmatprep.subr.mxu0 0.0
        %2400 = vmatpush1.msra.mxu0 0.0
        %2401 = vmatprep.subr.mxu0 0.0
        %2402 = vmatpush1.msra.mxu0 0.0
        %2403 = vmatprep.subr.mxu0 0.0
        %2404 = vmatpush1.msra.mxu0 0.0
        %2405 = vmatprep.subr.mxu0 0.0
        %2406 = vmatpush1.msra.mxu0 0.0
        %2407 = vmatprep.subr.mxu0 0.0
        %2408 = vmatpush1.msra.mxu0 0.0
        %2409 = vmatprep.subr.mxu0 0.0
        %2410 = vmatpush1.msra.mxu0 0.0
        %2411 = vmatprep.subr.mxu0 0.0
        %2412 = vmatpush1.msra.mxu0 0.0
        %2413 = vmatprep.subr.mxu0 0.0
        %2414 = vmatpush1.msra.mxu0 0.0
        %2415 = vmatprep.subr.mxu0 0.0
        %2416 = vmatpush1.msra.mxu0 0.0
        %2417 = vmatprep.subr.mxu0 0.0
        %2418 = vmatpush1.msra.mxu0 0.0
        %2419 = vmatprep.mubr.f32.mxu0 0.0
        %2420 = vmatmul.mubr.f32.gmra.mrb[0].mxu0 %v2288
        %v2421 = vpop.f32.mrb[0].mxu0
        %v2422 = vadd.f32 0.0, %v2421
        %v2423 = vpop.f32.mrb[0].mxu0
        %v2424 = vadd.f32 0.0, %v2423
        %2425 = vdwg.mxu0
        %2426 = vmatprep.subr.mxu0 %v2294
        %2427 = vmatpush1.msra.mxu0 %v2293
        %2428 = vmatprep.subr.mxu0 %v2298
        %2429 = vmatpush1.msra.mxu0 %v2297
        %2430 = vmatprep.subr.mxu0 %v2302
        %2431 = vmatpush1.msra.mxu0 %v2301
        %2432 = vmatprep.subr.mxu0 %v2306
        %2433 = vmatpush1.msra.mxu0 %v2305
        %2434 = vmatprep.subr.mxu0 %v2310
        %2435 = vmatpush1.msra.mxu0 %v2309
        %2436 = vmatprep.subr.mxu0 %v2314
        %2437 = vmatpush1.msra.mxu0 %v2313
        %2438 = vmatprep.subr.mxu0 %v2318
        %2439 = vmatpush1.msra.mxu0 %v2317
        %2440 = vmatprep.subr.mxu0 %v2322
        %2441 = vmatpush1.msra.mxu0 %v2321
        %2442 = vmatprep.subr.mxu0 %v2326
        %2443 = vmatpush1.msra.mxu0 %v2325
        %2444 = vmatprep.subr.mxu0 %v2330
        %2445 = vmatpush1.msra.mxu0 %v2329
        %2446 = vmatprep.subr.mxu0 %v2334
        %2447 = vmatpush1.msra.mxu0 %v2333
        %2448 = vmatprep.subr.mxu0 %v2338
        %2449 = vmatpush1.msra.mxu0 %v2337
        %2450 = vmatprep.subr.mxu0 %v2342
        %2451 = vmatpush1.msra.mxu0 %v2341
        %2452 = vmatprep.subr.mxu0 %v2346
        %2453 = vmatpush1.msra.mxu0 %v2345
        %2454 = vmatprep.subr.mxu0 %v2350
        %2455 = vmatpush1.msra.mxu0 %v2349
        %2456 = vmatprep.subr.mxu0 %v2354
        %2457 = vmatpush1.msra.mxu0 %v2353
        %2458 = vmatprep.subr.mxu0 0.0
        %2459 = vmatpush1.msra.mxu0 0.0
        %2460 = vmatprep.subr.mxu0 0.0
        %2461 = vmatpush1.msra.mxu0 0.0
        %2462 = vmatprep.subr.mxu0 0.0
        %2463 = vmatpush1.msra.mxu0 0.0
        %2464 = vmatprep.subr.mxu0 0.0
        %2465 = vmatpush1.msra.mxu0 0.0
        %2466 = vmatprep.subr.mxu0 0.0
        %2467 = vmatpush1.msra.mxu0 0.0
        %2468 = vmatprep.subr.mxu0 0.0
        %2469 = vmatpush1.msra.mxu0 0.0
        %2470 = vmatprep.subr.mxu0 0.0
        %2471 = vmatpush1.msra.mxu0 0.0
        %2472 = vmatprep.subr.mxu0 0.0
        %2473 = vmatpush1.msra.mxu0 0.0
        %2474 = vmatprep.subr.mxu0 0.0
        %2475 = vmatpush1.msra.mxu0 0.0
        %2476 = vmatprep.subr.mxu0 0.0
        %2477 = vmatpush1.msra.mxu0 0.0
        %2478 = vmatprep.subr.mxu0 0.0
        %2479 = vmatpush1.msra.mxu0 0.0
        %2480 = vmatprep.subr.mxu0 0.0
        %2481 = vmatpush1.msra.mxu0 0.0
        %2482 = vmatprep.subr.mxu0 0.0
        %2483 = vmatpush1.msra.mxu0 0.0
        %2484 = vmatprep.subr.mxu0 0.0
        %2485 = vmatpush1.msra.mxu0 0.0
        %2486 = vmatprep.subr.mxu0 0.0
        %2487 = vmatpush1.msra.mxu0 0.0
        %2488 = vmatprep.subr.mxu0 0.0
        %2489 = vmatpush1.msra.mxu0 0.0
        %2490 = vmatprep.mubr.f32.mxu0 0.0
        %2491 = vmatmul.mubr.f32.gmra.mrb[0].mxu0 %v2288
        %v2492 = vpop.f32.mrb[0].mxu0
        %v2493 = vadd.f32 0.0, %v2492
        %v2494 = vpop.f32.mrb[0].mxu0
        %v2495 = vadd.f32 0.0, %v2494
        %2496 = vdwg.mxu0
        %v2497 = vadd.f32 %v2213, %v2422
        %v2498 = vadd.f32 %v2214, %v2424
        %v2499 = vadd.f32 %v2215, %v2493
        %v2500 = vadd.f32 %v2216, %v2495
        %2501 = vst [vmem:[%s223 + $0x20] sm:$0xff] %v2497
        %2502 = vst [vmem:[%s223 + $0x28] sm:$0xff] %v2498
        %2503 = vst [vmem:[%s223 + $0x30] sm:$0xff] %v2499
        %2504 = vst [vmem:[%s223 + $0x38] sm:$0xff] %v2500
        %s2505 = smul.u32 8, %s20
        %p2506 = scmp.lt.s32.totalorder %s19, 1
        %s2507 = scalar_select %p2506, %s19, 1
        %p2508 = scmp.lt.s32.totalorder %s2505, 7
        %s2509 = scalar_select %p2508, %s2505, 7
        %s2510 = smul.addr %s2507, 8
        %s2511 = sadd.s32 %s2509, %s2510
        %s2512 = smul.addr %s2511, 8
        %s2513 = scalar_lea.vmem %s3, %s2512
        // Predicated region
        $region37: #{dupsampling_forward.1} parent=31 // pred_check
          %p2514 = pneg %p117
        $region38: #{dupsampling_forward.1} parent=31 // pred_check_branch
          %2516 = sbr.rel (%p2514) target = $region40
        $region39: #{dupsampling_forward.1} parent=31 // pred_region
          %s2517 = smul.u32 8, %s20
        $region40: #{dupsampling_forward.1} parent=31 // pred_fallthru
          _
      $region32: #{dupsampling_forward.1} parent=5 // pred_fallthru
        _
      %p2518 = scmp.le.s32.totalorder 2, %s10
      // Predicated region
      $region41: #{dupsampling_forward.1} parent=5 // pred_check
        %p2519 = pneg %p2518
      $region42: #{dupsampling_forward.1} parent=5 // pred_check_branch
        %2521 = sbr.rel (%p2519) target = $region44
      $region43: #{dupsampling_forward.1} parent=5 // pred_region
        %s2522 = ssub.s32 %s10, 2
        // Predicated region
        $region45: #{dupsampling_forward.1} parent=43 // pred_check
          %p2523 = pneg %p123
        $region46: #{dupsampling_forward.1} parent=43 // pred_check_branch
          %2525 = sbr.rel (%p2523) target = $region48
        $region47: #{dupsampling_forward.1} parent=43 // pred_region
          %s2526 = smul.u32 8, %s22
          %p2527 = scmp.lt.s32.totalorder %s21, 1
          %s2528 = scalar_select %p2527, %s21, 1
          %p2529 = scmp.lt.s32.totalorder %s2526, 7
          %s2530 = scalar_select %p2529, %s2526, 7
          %s2531 = smul.addr %s2528, 8
          %s2532 = sadd.s32 %s2530, %s2531
          %s2533 = smul.addr %s2532, 8
          %s2534 = scalar_lea.vmem %s3, %s2533
        $region48: #{dupsampling_forward.1} parent=43 // pred_fallthru
          _
      $region44: #{dupsampling_forward.1} parent=5 // pred_fallthru
        _
    $region6: #{dupsampling_forward.1} parent=1 // loop_footer
      %s14 = sadd.s32 1, %s10
    $region7: #{dupsampling_forward.1} parent=1 // loop_footer_branch
      %9 = sbr.rel target = $region3
    $region8: #{dupsampling_forward.1} parent=1 // loop_exit
      _
    %2535 = vsyncpa [#allocation3], 1
    %s2536 = scalar_lea.sflag [#allocation3], 1
    %2537 = vsyncpa %s2536, 1

</llo_original>
